<compile_context>
chip_gen: v6e
topology: v6e:2x2x1
jax: 0.10.0
libtpu: 0.0.40
codegen_flags: <defaults>
</compile_context>

<pallas_src>
import functools

import jax
import jax.numpy as jnp
from jax.experimental import pallas as pl
from jax.experimental.pallas import tpu as pltpu


def mha_kernel(x_ref, wqkv_ref, wp_ref, bp_ref, out_ref, ctx_ref,
               *, B, T, n_head, scale):
    C = wp_ref.shape[0]
    hs = C // n_head

    x = x_ref[...].astype(jnp.float32)                      # (B*T, C)

    # Single fused QKV projection on the MXU: (B*T, C) @ (C, 3C).
    qkv = jnp.dot(x, wqkv_ref[...], preferred_element_type=jnp.float32)

    # Fold the softmax scale into q (cheaper than scaling the (T, T) scores).
    q = (qkv[:, 0 * C:1 * C] * scale).reshape(B, T, C)
    k = qkv[:, 1 * C:2 * C].reshape(B, T, C)
    v = qkv[:, 2 * C:3 * C].reshape(B, T, C)

    # Causal mask, built once per kernel invocation (single grid step).
    row = jax.lax.broadcasted_iota(jnp.int32, (T, T), 0)
    col = jax.lax.broadcasted_iota(jnp.int32, (T, T), 1)
    causal = (col <= row)[None, :, :]                       # (1, T, T)
    neg = jnp.float32(-1e30)                                # finite negative

    for h in range(n_head):                                 # static unroll (n_head small)
        lo, hi = h * hs, (h + 1) * hs
        qh = q[:, :, lo:hi]                                 # (B, T, hs)
        kh = k[:, :, lo:hi]
        vh = v[:, :, lo:hi]

        # Batched over B on the MXU.
        s = jnp.einsum('bqd,bkd->bqk', qh, kh,
                       preferred_element_type=jnp.float32)   # (B, T, T)
        s = jnp.where(causal, s, neg)

        # Numerically stable softmax along the last axis.
        m = jnp.max(s, axis=-1, keepdims=True)
        p = jnp.exp(s - m)
        denom = jnp.sum(p, axis=-1, keepdims=True)
        p = p * pl.reciprocal(denom, approx=True)            # EUP reciprocal

        # Write this head's context into its column block (no concatenate).
        ctx_ref[:, :, lo:hi] = jnp.einsum('bqk,bkd->bqd', p, vh,
                                          preferred_element_type=jnp.float32)

    # Output projection (+ bias) over the full lane-dense (B*T, C) slab.
    ctx = ctx_ref[...].reshape(B * T, C)
    y = jnp.dot(ctx, wp_ref[...], preferred_element_type=jnp.float32) + bp_ref[...]
    out_ref[...] = y.astype(out_ref.dtype)


def multi_head_attention(x, wk, wq, wv, wp, bp, *, n_head):
    """x: (B, T, C). wk/wq/wv/wp: (C, C) (already transposed, y = x @ W).
    bp: (1, C). Returns (B, T, C)."""
    B, T, C = x.shape
    scale = float(C) ** -0.5                                 # module uses n_embd**-0.5
    # Pack Q|K|V projection weights once in the wrapper -> one fused matmul.
    wqkv = jnp.concatenate([wq, wk, wv], axis=1)             # (C, 3C)
    x2d = x.reshape(B * T, C)                                # fold batch into M

    kernel = functools.partial(mha_kernel, B=B, T=T, n_head=n_head, scale=scale)
    out2d = pl.pallas_call(
        kernel,
        out_shape=jax.ShapeDtypeStruct((B * T, C), x.dtype),
        in_specs=[pl.BlockSpec(memory_space=pltpu.MemorySpace.VMEM)] * 4,
        out_specs=pl.BlockSpec(memory_space=pltpu.MemorySpace.VMEM),
        scratch_shapes=[pltpu.VMEM((B, T, C), jnp.float32)],
    )(x2d, wqkv, wp, bp)
    return out2d.reshape(B, T, C)


def reference_mha(x, wk, wq, wv, wp, bp, *, n_head):
    """Pure-JAX reference matching the PyTorch module (eval mode)."""
    B, T, C = x.shape
    hs = C // n_head
    scale = float(C) ** -0.5
    k = x @ wk
    q = x @ wq
    v = x @ wv
    mask = jnp.tril(jnp.ones((T, T), dtype=bool))
    outs = []
    for h in range(n_head):
        qh = q[..., h * hs:(h + 1) * hs]
        kh = k[..., h * hs:(h + 1) * hs]
        vh = v[..., h * hs:(h + 1) * hs]
        wei = jnp.einsum('btd,bsd->bts', qh, kh) * scale
        wei = jnp.where(mask, wei, -jnp.inf)
        wei = jax.nn.softmax(wei, axis=-1)
        outs.append(jnp.einsum('bts,bsd->btd', wei, vh))
    cat = jnp.concatenate(outs, axis=-1)
    return cat @ wp + bp


if __name__ == "__main__":
    # config: n_embd=32, n_head=4, block_size=8 (== T), dropout_percent=0.0
    B, T, C, H = 2, 8, 32, 4

    key = jax.random.PRNGKey(0)
    kx, kk, kq, kv, kp, kb = jax.random.split(key, 6)

    x = jax.random.normal(kx, (B, T, C), dtype=jnp.float32)
    # combined per-head projection weights (columns h*hs:(h+1)*hs belong to head h)
    wk = jax.random.normal(kk, (C, C), dtype=jnp.float32) * 0.1
    wq = jax.random.normal(kq, (C, C), dtype=jnp.float32) * 0.1
    wv = jax.random.normal(kv, (C, C), dtype=jnp.float32) * 0.1
    wp = jax.random.normal(kp, (C, C), dtype=jnp.float32) * 0.1
    bp = jax.random.normal(kb, (1, C), dtype=jnp.float32) * 0.1

    out = multi_head_attention(x, wk, wq, wv, wp, bp, n_head=H)
    out = jax.block_until_ready(out)

    ref = reference_mha(x, wk, wq, wv, wp, bp, n_head=H)
    assert out.shape == (B, T, C)
    err = float(jnp.max(jnp.abs(out - ref)))
    # slightly looser than pure-f32 due to approx (EUP) reciprocal in softmax
    assert err < 2e-3, f"mismatch vs reference, max abs err {err}"

    print("KERNEL_OK")
</pallas_src>

<mosaic_0001>
module attributes {stable_mosaic.version = 11 : i64} {
  func.func @mha_kernel(%arg0: memref<16x32xf32, #tpu.memory_space<vmem>>, %arg1: memref<32x96xf32, #tpu.memory_space<vmem>>, %arg2: memref<32x32xf32, #tpu.memory_space<vmem>>, %arg3: memref<1x32xf32, #tpu.memory_space<vmem>>, %arg4: memref<16x32xf32, #tpu.memory_space<vmem>>, %arg5: memref<2x8x32xf32, #tpu.memory_space<vmem>>) attributes {dimension_semantics = [], scalar_prefetch = 0 : i64, scratch_operands = 1 : i64, tpu.core_type = #tpu.core_type<tc>} {
    %c0 = arith.constant 0 : index
    %c0_0 = arith.constant 0 : index
    %0 = vector.load %arg0[%c0, %c0_0] : memref<16x32xf32, #tpu.memory_space<vmem>>, vector<16x32xf32>
    %c0_1 = arith.constant 0 : index
    %c0_2 = arith.constant 0 : index
    %1 = vector.load %arg1[%c0_1, %c0_2] : memref<32x96xf32, #tpu.memory_space<vmem>>, vector<32x96xf32>
    %cst = arith.constant dense<0.000000e+00> : vector<16x96xf32>
    %2 = tpu.matmul %0, %1, %cst {dimension_numbers = #tpu.dot_dimension_numbers<[1], [0], [0], [1], [0, 0, 1, 1], [], []>} : vector<16x32xf32>, vector<32x96xf32>, vector<16x96xf32> -> vector<16x96xf32>
    %3 = vector.extract_strided_slice %2 {offsets = [0, 0], sizes = [16, 32], strides = [1, 1]} : vector<16x96xf32> to vector<16x32xf32>
    %cst_3 = arith.constant 0.176776692 : f32
    %4 = vector.broadcast %cst_3 : f32 to vector<16x32xf32>
    %5 = arith.mulf %3, %4 : vector<16x32xf32>
    %6 = vector.shape_cast %5 : vector<16x32xf32> to vector<2x8x32xf32>
    %7 = vector.extract_strided_slice %2 {offsets = [0, 32], sizes = [16, 32], strides = [1, 1]} : vector<16x96xf32> to vector<16x32xf32>
    %8 = vector.shape_cast %7 : vector<16x32xf32> to vector<2x8x32xf32>
    %9 = vector.extract_strided_slice %2 {offsets = [0, 64], sizes = [16, 32], strides = [1, 1]} : vector<16x96xf32> to vector<16x32xf32>
    %10 = vector.shape_cast %9 : vector<16x32xf32> to vector<2x8x32xf32>
    %11 = tpu.iota {dimensions = array<i32: 0>} : vector<8x8xi32>
    %12 = tpu.iota {dimensions = array<i32: 1>} : vector<8x8xi32>
    %13 = arith.cmpi sle, %12, %11 : vector<8x8xi32>
    %14 = vector.shape_cast %13 : vector<8x8xi1> to vector<1x8x8xi1>
    %15 = vector.extract_strided_slice %6 {offsets = [0, 0, 0], sizes = [2, 8, 8], strides = [1, 1, 1]} : vector<2x8x32xf32> to vector<2x8x8xf32>
    %16 = vector.extract_strided_slice %8 {offsets = [0, 0, 0], sizes = [2, 8, 8], strides = [1, 1, 1]} : vector<2x8x32xf32> to vector<2x8x8xf32>
    %17 = vector.extract_strided_slice %10 {offsets = [0, 0, 0], sizes = [2, 8, 8], strides = [1, 1, 1]} : vector<2x8x32xf32> to vector<2x8x8xf32>
    "tpu.trace_start"() <{level = 10 : i32, message = "bqd,bkd->bqk"}> : () -> ()
    %cst_4 = arith.constant dense<0.000000e+00> : vector<2x8x8xf32>
    %18 = tpu.matmul %15, %16, %cst_4 {dimension_numbers = #tpu.dot_dimension_numbers<[2], [2], [1], [1], [0, 0, 0, 1, 1, 1], [0], [0]>} : vector<2x8x8xf32>, vector<2x8x8xf32>, vector<2x8x8xf32> -> vector<2x8x8xf32>
    %cst_5 = arith.constant -1.000000e+30 : f32
    "tpu.trace_stop"() : () -> ()
    %19 = vector.shape_cast %14 : vector<1x8x8xi1> to vector<1x8x8xi1>
    %20 = vector.broadcast %19 : vector<1x8x8xi1> to vector<2x8x8xi1>
    %21 = vector.broadcast %cst_5 : f32 to vector<2x8x8xf32>
    %22 = arith.select %20, %18, %21 : vector<2x8x8xi1>, vector<2x8x8xf32>
    %cst_6 = arith.constant dense<0xFF800000> : vector<2x8xf32>
    %23 = vector.multi_reduction <maximumf>, %22, %cst_6 [2] : vector<2x8x8xf32> to vector<2x8xf32>
    %24 = vector.shape_cast %23 : vector<2x8xf32> to vector<2x8x1xf32>
    %25 = vector.broadcast %24 : vector<2x8x1xf32> to vector<2x8x8xf32>
    %26 = arith.subf %22, %25 : vector<2x8x8xf32>
    %27 = math.exp %26 : vector<2x8x8xf32>
    %cst_7 = arith.constant dense<0.000000e+00> : vector<2x8xf32>
    %28 = vector.multi_reduction <add>, %27, %cst_7 [2] : vector<2x8x8xf32> to vector<2x8xf32>
    %29 = vector.shape_cast %28 : vector<2x8xf32> to vector<2x8x1xf32>
    %30 = tpu.reciprocal %29 {approx = true} : vector<2x8x1xf32> -> vector<2x8x1xf32>
    %31 = vector.broadcast %30 : vector<2x8x1xf32> to vector<2x8x8xf32>
    %32 = arith.mulf %27, %31 : vector<2x8x8xf32>
    "tpu.trace_start"() <{level = 10 : i32, message = "bqk,bkd->bqd"}> : () -> ()
    %cst_8 = arith.constant dense<0.000000e+00> : vector<2x8x8xf32>
    %33 = tpu.matmul %32, %17, %cst_8 {dimension_numbers = #tpu.dot_dimension_numbers<[2], [1], [1], [2], [0, 0, 0, 1, 1, 2], [0], [0]>} : vector<2x8x8xf32>, vector<2x8x8xf32>, vector<2x8x8xf32> -> vector<2x8x8xf32>
    "tpu.trace_stop"() : () -> ()
    %c0_9 = arith.constant 0 : index
    %c0_10 = arith.constant 0 : index
    %c0_11 = arith.constant 0 : index
    %34 = vector.load %arg5[%c0_9, %c0_10, %c0_11] : memref<2x8x32xf32, #tpu.memory_space<vmem>>, vector<2x8x8xf32>
    tpu.vector_store %arg5[%c0_9, %c0_10, %c0_11], %33 {strides = array<i32>} : memref<2x8x32xf32, #tpu.memory_space<vmem>>, vector<2x8x8xf32>,
    %35 = vector.extract_strided_slice %6 {offsets = [0, 0, 8], sizes = [2, 8, 8], strides = [1, 1, 1]} : vector<2x8x32xf32> to vector<2x8x8xf32>
    %36 = vector.extract_strided_slice %8 {offsets = [0, 0, 8], sizes = [2, 8, 8], strides = [1, 1, 1]} : vector<2x8x32xf32> to vector<2x8x8xf32>
    %37 = vector.extract_strided_slice %10 {offsets = [0, 0, 8], sizes = [2, 8, 8], strides = [1, 1, 1]} : vector<2x8x32xf32> to vector<2x8x8xf32>
    "tpu.trace_start"() <{level = 10 : i32, message = "bqd,bkd->bqk"}> : () -> ()
    %cst_12 = arith.constant dense<0.000000e+00> : vector<2x8x8xf32>
    %38 = tpu.matmul %35, %36, %cst_12 {dimension_numbers = #tpu.dot_dimension_numbers<[2], [2], [1], [1], [0, 0, 0, 1, 1, 1], [0], [0]>} : vector<2x8x8xf32>, vector<2x8x8xf32>, vector<2x8x8xf32> -> vector<2x8x8xf32>
    %cst_13 = arith.constant -1.000000e+30 : f32
    "tpu.trace_stop"() : () -> ()
    %39 = vector.shape_cast %14 : vector<1x8x8xi1> to vector<1x8x8xi1>
    %40 = vector.broadcast %39 : vector<1x8x8xi1> to vector<2x8x8xi1>
    %41 = vector.broadcast %cst_13 : f32 to vector<2x8x8xf32>
    %42 = arith.select %40, %38, %41 : vector<2x8x8xi1>, vector<2x8x8xf32>
    %cst_14 = arith.constant dense<0xFF800000> : vector<2x8xf32>
    %43 = vector.multi_reduction <maximumf>, %42, %cst_14 [2] : vector<2x8x8xf32> to vector<2x8xf32>
    %44 = vector.shape_cast %43 : vector<2x8xf32> to vector<2x8x1xf32>
    %45 = vector.broadcast %44 : vector<2x8x1xf32> to vector<2x8x8xf32>
    %46 = arith.subf %42, %45 : vector<2x8x8xf32>
    %47 = math.exp %46 : vector<2x8x8xf32>
    %cst_15 = arith.constant dense<0.000000e+00> : vector<2x8xf32>
    %48 = vector.multi_reduction <add>, %47, %cst_15 [2] : vector<2x8x8xf32> to vector<2x8xf32>
    %49 = vector.shape_cast %48 : vector<2x8xf32> to vector<2x8x1xf32>
    %50 = tpu.reciprocal %49 {approx = true} : vector<2x8x1xf32> -> vector<2x8x1xf32>
    %51 = vector.broadcast %50 : vector<2x8x1xf32> to vector<2x8x8xf32>
    %52 = arith.mulf %47, %51 : vector<2x8x8xf32>
    "tpu.trace_start"() <{level = 10 : i32, message = "bqk,bkd->bqd"}> : () -> ()
    %cst_16 = arith.constant dense<0.000000e+00> : vector<2x8x8xf32>
    %53 = tpu.matmul %52, %37, %cst_16 {dimension_numbers = #tpu.dot_dimension_numbers<[2], [1], [1], [2], [0, 0, 0, 1, 1, 2], [0], [0]>} : vector<2x8x8xf32>, vector<2x8x8xf32>, vector<2x8x8xf32> -> vector<2x8x8xf32>
    "tpu.trace_stop"() : () -> ()
    %c0_17 = arith.constant 0 : index
    %c0_18 = arith.constant 0 : index
    %c8 = arith.constant 8 : index
    %54 = vector.load %arg5[%c0_17, %c0_18, %c8] : memref<2x8x32xf32, #tpu.memory_space<vmem>>, vector<2x8x8xf32>
    tpu.vector_store %arg5[%c0_17, %c0_18, %c8], %53 {strides = array<i32>} : memref<2x8x32xf32, #tpu.memory_space<vmem>>, vector<2x8x8xf32>,
    %55 = vector.extract_strided_slice %6 {offsets = [0, 0, 16], sizes = [2, 8, 8], strides = [1, 1, 1]} : vector<2x8x32xf32> to vector<2x8x8xf32>
    %56 = vector.extract_strided_slice %8 {offsets = [0, 0, 16], sizes = [2, 8, 8], strides = [1, 1, 1]} : vector<2x8x32xf32> to vector<2x8x8xf32>
    %57 = vector.extract_strided_slice %10 {offsets = [0, 0, 16], sizes = [2, 8, 8], strides = [1, 1, 1]} : vector<2x8x32xf32> to vector<2x8x8xf32>
    "tpu.trace_start"() <{level = 10 : i32, message = "bqd,bkd->bqk"}> : () -> ()
    %cst_19 = arith.constant dense<0.000000e+00> : vector<2x8x8xf32>
    %58 = tpu.matmul %55, %56, %cst_19 {dimension_numbers = #tpu.dot_dimension_numbers<[2], [2], [1], [1], [0, 0, 0, 1, 1, 1], [0], [0]>} : vector<2x8x8xf32>, vector<2x8x8xf32>, vector<2x8x8xf32> -> vector<2x8x8xf32>
    %cst_20 = arith.constant -1.000000e+30 : f32
    "tpu.trace_stop"() : () -> ()
    %59 = vector.shape_cast %14 : vector<1x8x8xi1> to vector<1x8x8xi1>
    %60 = vector.broadcast %59 : vector<1x8x8xi1> to vector<2x8x8xi1>
    %61 = vector.broadcast %cst_20 : f32 to vector<2x8x8xf32>
    %62 = arith.select %60, %58, %61 : vector<2x8x8xi1>, vector<2x8x8xf32>
    %cst_21 = arith.constant dense<0xFF800000> : vector<2x8xf32>
    %63 = vector.multi_reduction <maximumf>, %62, %cst_21 [2] : vector<2x8x8xf32> to vector<2x8xf32>
    %64 = vector.shape_cast %63 : vector<2x8xf32> to vector<2x8x1xf32>
    %65 = vector.broadcast %64 : vector<2x8x1xf32> to vector<2x8x8xf32>
    %66 = arith.subf %62, %65 : vector<2x8x8xf32>
    %67 = math.exp %66 : vector<2x8x8xf32>
    %cst_22 = arith.constant dense<0.000000e+00> : vector<2x8xf32>
    %68 = vector.multi_reduction <add>, %67, %cst_22 [2] : vector<2x8x8xf32> to vector<2x8xf32>
    %69 = vector.shape_cast %68 : vector<2x8xf32> to vector<2x8x1xf32>
    %70 = tpu.reciprocal %69 {approx = true} : vector<2x8x1xf32> -> vector<2x8x1xf32>
    %71 = vector.broadcast %70 : vector<2x8x1xf32> to vector<2x8x8xf32>
    %72 = arith.mulf %67, %71 : vector<2x8x8xf32>
    "tpu.trace_start"() <{level = 10 : i32, message = "bqk,bkd->bqd"}> : () -> ()
    %cst_23 = arith.constant dense<0.000000e+00> : vector<2x8x8xf32>
    %73 = tpu.matmul %72, %57, %cst_23 {dimension_numbers = #tpu.dot_dimension_numbers<[2], [1], [1], [2], [0, 0, 0, 1, 1, 2], [0], [0]>} : vector<2x8x8xf32>, vector<2x8x8xf32>, vector<2x8x8xf32> -> vector<2x8x8xf32>
    "tpu.trace_stop"() : () -> ()
    %c0_24 = arith.constant 0 : index
    %c0_25 = arith.constant 0 : index
    %c16 = arith.constant 16 : index
    %74 = vector.load %arg5[%c0_24, %c0_25, %c16] : memref<2x8x32xf32, #tpu.memory_space<vmem>>, vector<2x8x8xf32>
    tpu.vector_store %arg5[%c0_24, %c0_25, %c16], %73 {strides = array<i32>} : memref<2x8x32xf32, #tpu.memory_space<vmem>>, vector<2x8x8xf32>,
    %75 = vector.extract_strided_slice %6 {offsets = [0, 0, 24], sizes = [2, 8, 8], strides = [1, 1, 1]} : vector<2x8x32xf32> to vector<2x8x8xf32>
    %76 = vector.extract_strided_slice %8 {offsets = [0, 0, 24], sizes = [2, 8, 8], strides = [1, 1, 1]} : vector<2x8x32xf32> to vector<2x8x8xf32>
    %77 = vector.extract_strided_slice %10 {offsets = [0, 0, 24], sizes = [2, 8, 8], strides = [1, 1, 1]} : vector<2x8x32xf32> to vector<2x8x8xf32>
    "tpu.trace_start"() <{level = 10 : i32, message = "bqd,bkd->bqk"}> : () -> ()
    %cst_26 = arith.constant dense<0.000000e+00> : vector<2x8x8xf32>
    %78 = tpu.matmul %75, %76, %cst_26 {dimension_numbers = #tpu.dot_dimension_numbers<[2], [2], [1], [1], [0, 0, 0, 1, 1, 1], [0], [0]>} : vector<2x8x8xf32>, vector<2x8x8xf32>, vector<2x8x8xf32> -> vector<2x8x8xf32>
    %cst_27 = arith.constant -1.000000e+30 : f32
    "tpu.trace_stop"() : () -> ()
    %79 = vector.shape_cast %14 : vector<1x8x8xi1> to vector<1x8x8xi1>
    %80 = vector.broadcast %79 : vector<1x8x8xi1> to vector<2x8x8xi1>
    %81 = vector.broadcast %cst_27 : f32 to vector<2x8x8xf32>
    %82 = arith.select %80, %78, %81 : vector<2x8x8xi1>, vector<2x8x8xf32>
    %cst_28 = arith.constant dense<0xFF800000> : vector<2x8xf32>
    %83 = vector.multi_reduction <maximumf>, %82, %cst_28 [2] : vector<2x8x8xf32> to vector<2x8xf32>
    %84 = vector.shape_cast %83 : vector<2x8xf32> to vector<2x8x1xf32>
    %85 = vector.broadcast %84 : vector<2x8x1xf32> to vector<2x8x8xf32>
    %86 = arith.subf %82, %85 : vector<2x8x8xf32>
    %87 = math.exp %86 : vector<2x8x8xf32>
    %cst_29 = arith.constant dense<0.000000e+00> : vector<2x8xf32>
    %88 = vector.multi_reduction <add>, %87, %cst_29 [2] : vector<2x8x8xf32> to vector<2x8xf32>
    %89 = vector.shape_cast %88 : vector<2x8xf32> to vector<2x8x1xf32>
    %90 = tpu.reciprocal %89 {approx = true} : vector<2x8x1xf32> -> vector<2x8x1xf32>
    %91 = vector.broadcast %90 : vector<2x8x1xf32> to vector<2x8x8xf32>
    %92 = arith.mulf %87, %91 : vector<2x8x8xf32>
    "tpu.trace_start"() <{level = 10 : i32, message = "bqk,bkd->bqd"}> : () -> ()
    %cst_30 = arith.constant dense<0.000000e+00> : vector<2x8x8xf32>
    %93 = tpu.matmul %92, %77, %cst_30 {dimension_numbers = #tpu.dot_dimension_numbers<[2], [1], [1], [2], [0, 0, 0, 1, 1, 2], [0], [0]>} : vector<2x8x8xf32>, vector<2x8x8xf32>, vector<2x8x8xf32> -> vector<2x8x8xf32>
    "tpu.trace_stop"() : () -> ()
    %c0_31 = arith.constant 0 : index
    %c0_32 = arith.constant 0 : index
    %c24 = arith.constant 24 : index
    %94 = vector.load %arg5[%c0_31, %c0_32, %c24] : memref<2x8x32xf32, #tpu.memory_space<vmem>>, vector<2x8x8xf32>
    tpu.vector_store %arg5[%c0_31, %c0_32, %c24], %93 {strides = array<i32>} : memref<2x8x32xf32, #tpu.memory_space<vmem>>, vector<2x8x8xf32>,
    %c0_33 = arith.constant 0 : index
    %c0_34 = arith.constant 0 : index
    %c0_35 = arith.constant 0 : index
    %95 = vector.load %arg5[%c0_33, %c0_34, %c0_35] : memref<2x8x32xf32, #tpu.memory_space<vmem>>, vector<2x8x32xf32>
    %96 = vector.shape_cast %95 : vector<2x8x32xf32> to vector<16x32xf32>
    %c0_36 = arith.constant 0 : index
    %c0_37 = arith.constant 0 : index
    %97 = vector.load %arg2[%c0_36, %c0_37] : memref<32x32xf32, #tpu.memory_space<vmem>>, vector<32x32xf32>
    %cst_38 = arith.constant dense<0.000000e+00> : vector<16x32xf32>
    %98 = tpu.matmul %96, %97, %cst_38 {dimension_numbers = #tpu.dot_dimension_numbers<[1], [0], [0], [1], [0, 0, 1, 1], [], []>} : vector<16x32xf32>, vector<32x32xf32>, vector<16x32xf32> -> vector<16x32xf32>
    %c0_39 = arith.constant 0 : index
    %c0_40 = arith.constant 0 : index
    %99 = vector.load %arg3[%c0_39, %c0_40] : memref<1x32xf32, #tpu.memory_space<vmem>>, vector<1x32xf32>
    %100 = vector.broadcast %99 : vector<1x32xf32> to vector<16x32xf32>
    %101 = arith.addf %98, %100 : vector<16x32xf32>
    %c0_41 = arith.constant 0 : index
    %c0_42 = arith.constant 0 : index
    %102 = vector.load %arg4[%c0_41, %c0_42] : memref<16x32xf32, #tpu.memory_space<vmem>>, vector<16x32xf32>
    tpu.vector_store %arg4[%c0_41, %c0_42], %101 {strides = array<i32>} : memref<16x32xf32, #tpu.memory_space<vmem>>, vector<16x32xf32>,
    return
  }
}

</mosaic_0001>

<llo_original>
// kernel: tpu_custom_call.1
$region0: #{tpu_custom_call.1}
  #allocation0 [shape = 'u32[]', space=smem, size = 0x4, offset = 0x4, fixed_abs, tag = 'smem constant byte address 0x4 - core index']
  #allocation1 [shape = 'u32[144,128]{1,0:T(1,128)}', space=vmem, size = 0x12000, scoped, tag = 'internal scratch']
  #allocation2 [shape = 'f32[2,8,32]{2,1,0:T(8,128)}', space=vmem, size = 0x2000, scoped, tag = 'scratch operand']
  %s0 = inlined_call_operand.hbm [shape: f32[16,32], index: 0, kind: input, shape index: {}]
  %s1 = inlined_call_operand.hbm [shape: f32[32,96], index: 1, kind: input, shape index: {}]
  %s2 = inlined_call_operand.hbm [shape: f32[32,32], index: 2, kind: input, shape index: {}]
  %s3 = inlined_call_operand.vmem [shape: f32[1,32], index: 3, kind: input, shape index: {}]
  %s4 = inlined_call_operand.hbm [shape: f32[16,32], index: 4, kind: output, shape index: {}]
  %s5 = sld [smem:[#allocation0]]
  $region38: #{tpu_custom_call.1} parent=0
    _
  %s7 = ssub.s32 1, %s5
  %s8 = scalar_select 0, %s7, %s5
  $region1: #{tpu_custom_call.1} parent=0
    #allocation3 [shape = 'u8[8192]{0}', space=vmem, size = 0x2000, scoped, tag = 'input window, operand 0, single buffered']
    #allocation4 [shape = 's32[1]{0}', space=sflag, size = 0x4, scoped, tag = 'scoped memory for tpu_custom_call.1']
    #allocation5 [shape = 's32[1]{0}', space=sflag, size = 0x4, scoped, tag = 'scoped memory for tpu_custom_call.1']
    #allocation6 [shape = 'u8[16384]{0}', space=vmem, size = 0x4000, scoped, tag = 'input window, operand 1, single buffered']
    #allocation7 [shape = 's32[1]{0}', space=sflag, size = 0x4, scoped, tag = 'scoped memory for tpu_custom_call.1']
    #allocation8 [shape = 'u8[16384]{0}', space=vmem, size = 0x4000, scoped, tag = 'input window, operand 2, single buffered']
    #allocation9 [shape = 'u8[8192]{0}', space=vmem, size = 0x2000, scoped, tag = 'output window, operand 0, single buffered']
    %9 = vsyncpa [#allocation4], 0
    %10 = vsyncpa [#allocation7], 0
    %11 = vsyncpa [#allocation5], 0
    // Predicated region
    $region2: #{tpu_custom_call.1} parent=1 // pred_check
      _
    $region3: #{tpu_custom_call.1} parent=1 // pred_check_branch
      %13 = sbr.rel (0) target = $region5
    $region4: #{tpu_custom_call.1} parent=1 // pred_region
      %s15 = ssub.s32 256, 256
      %16 = vsyncadd [#allocation4], %s15
      %s17 = sshll.u32 [#allocation3], 4
      %s18 = int_to_ptr.vmem [resolvable:$true] %s17
      %23 = dma.hbm_to_vmem [thread:$0]  %s0, 256, %s18, [#allocation4], 128, 128, 8
    $region5: #{tpu_custom_call.1} parent=1 // pred_fallthru
      _
    // Predicated region
    $region6: #{tpu_custom_call.1} parent=1 // pred_check
      _
    $region7: #{tpu_custom_call.1} parent=1 // pred_check_branch
      %25 = sbr.rel (0) target = $region9
    $region8: #{tpu_custom_call.1} parent=1 // pred_region
      %s27 = ssub.s32 512, 512
      %28 = vsyncadd [#allocation7], %s27
      %s29 = sshll.u32 [#allocation6], 4
      %s30 = int_to_ptr.vmem [resolvable:$true] %s29
      %35 = dma.hbm_to_vmem [thread:$0]  %s1, 512, %s30, [#allocation7], 128, 128, 8
    $region9: #{tpu_custom_call.1} parent=1 // pred_fallthru
      _
    // Predicated region
    $region10: #{tpu_custom_call.1} parent=1 // pred_check
      _
    $region11: #{tpu_custom_call.1} parent=1 // pred_check_branch
      %37 = sbr.rel (0) target = $region13
    $region12: #{tpu_custom_call.1} parent=1 // pred_region
      %s39 = ssub.s32 512, 512
      %40 = vsyncadd [#allocation7], %s39
      %s41 = sshll.u32 [#allocation8], 4
      %s42 = int_to_ptr.vmem [resolvable:$true] %s41
      %47 = dma.hbm_to_vmem [thread:$0]  %s2, 512, %s42, [#allocation7], 128, 128, 8
    $region13: #{tpu_custom_call.1} parent=1 // pred_fallthru
      _
    // Predicated region
    $region14: #{tpu_custom_call.1} parent=1 // pred_check
      _
    $region15: #{tpu_custom_call.1} parent=1 // pred_check_branch
      %49 = sbr.rel (0) target = $region17
    $region16: #{tpu_custom_call.1} parent=1 // pred_region
      _
    $region17: #{tpu_custom_call.1} parent=1 // pred_fallthru
      _
    // Predicated region
    $region18: #{tpu_custom_call.1} parent=1 // pred_check
      _
    $region19: #{tpu_custom_call.1} parent=1 // pred_check_branch
      %51 = sbr.rel (0) target = $region21
    $region20: #{tpu_custom_call.1} parent=1 // pred_region
      %52 = dma.done [#allocation4], 256
    $region21: #{tpu_custom_call.1} parent=1 // pred_fallthru
      _
    // Predicated region
    $region22: #{tpu_custom_call.1} parent=1 // pred_check
      _
    $region23: #{tpu_custom_call.1} parent=1 // pred_check_branch
      %54 = sbr.rel (0) target = $region25
    $region24: #{tpu_custom_call.1} parent=1 // pred_region
      %55 = dma.done [#allocation7], 512
    $region25: #{tpu_custom_call.1} parent=1 // pred_fallthru
      _
    // Predicated region
    $region26: #{tpu_custom_call.1} parent=1 // pred_check
      _
    $region27: #{tpu_custom_call.1} parent=1 // pred_check_branch
      %57 = sbr.rel (0) target = $region29
    $region28: #{tpu_custom_call.1} parent=1 // pred_region
      %58 = dma.done [#allocation7], 512
    $region29: #{tpu_custom_call.1} parent=1 // pred_fallthru
      _
    %v59 = vld [vmem:[#allocation3] sm:$0xff]
    %v60 = vld [vmem:[#allocation3 + $0x8] sm:$0xff]
    %v61 = vld [vmem:[#allocation6] sm:$0xff]
    %v62 = vld [vmem:[#allocation6 + $0x8] sm:$0xff]
    %v63 = vld [vmem:[#allocation6 + $0x10] sm:$0xff]
    %v64 = vld [vmem:[#allocation6 + $0x18] sm:$0xff]
    %vm65 = vcmask 261120
    %v67 = vsel %vm65, %v59, 0
    %v70 = vsel %vm65, %v60, 0
    %72 = vmatprep.subr.mxu0 0.0
    %73 = vmatpush1.msra.mxu0 0.0
    %74 = vmatprep.subr.mxu0 0.0
    %75 = vmatpush1.msra.mxu0 0.0
    %76 = vmatprep.subr.mxu0 0.0
    %77 = vmatpush1.msra.mxu0 0.0
    %78 = vmatprep.subr.mxu0 0.0
    %79 = vmatpush1.msra.mxu0 0.0
    %80 = vmatprep.subr.mxu0 0.0
    %81 = vmatpush1.msra.mxu0 0.0
    %82 = vmatprep.subr.mxu0 0.0
    %83 = vmatpush1.msra.mxu0 0.0
    %84 = vmatprep.subr.mxu0 0.0
    %85 = vmatpush1.msra.mxu0 0.0
    %86 = vmatprep.subr.mxu0 0.0
    %87 = vmatpush1.msra.mxu0 0.0
    %88 = vmatprep.subr.mxu0 0.0
    %89 = vmatpush1.msra.mxu0 0.0
    %90 = vmatprep.subr.mxu0 0.0
    %91 = vmatpush1.msra.mxu0 0.0
    %92 = vmatprep.subr.mxu0 0.0
    %93 = vmatpush1.msra.mxu0 0.0
    %94 = vmatprep.subr.mxu0 0.0
    %95 = vmatpush1.msra.mxu0 0.0
    %96 = vmatprep.subr.mxu0 0.0
    %97 = vmatpush1.msra.mxu0 %v64
    %98 = vmatprep.subr.mxu0 0.0
    %99 = vmatpush1.msra.mxu0 %v63
    %100 = vmatprep.subr.mxu0 0.0
    %101 = vmatpush1.msra.mxu0 %v62
    %102 = vmatprep.subr.mxu0 0.0
    %103 = vmatpush1.msra.mxu0 %v61
    %104 = vmatprep.subr.mxu0 0.0
    %105 = vmatpush2.msra.mxu0 0.0
    %106 = vmatprep.subr.mxu0 0.0
    %107 = vmatpush2.msra.mxu0 0.0
    %108 = vmatprep.subr.mxu0 0.0
    %109 = vmatpush2.msra.mxu0 0.0
    %110 = vmatprep.subr.mxu0 0.0
    %111 = vmatpush2.msra.mxu0 0.0
    %112 = vmatprep.subr.mxu0 0.0
    %113 = vmatpush2.msra.mxu0 0.0
    %114 = vmatprep.subr.mxu0 0.0
    %115 = vmatpush2.msra.mxu0 0.0
    %116 = vmatprep.subr.mxu0 0.0
    %117 = vmatpush2.msra.mxu0 0.0
    %118 = vmatprep.subr.mxu0 0.0
    %119 = vmatpush2.msra.mxu0 0.0
    %120 = vmatprep.subr.mxu0 0.0
    %121 = vmatpush2.msra.mxu0 0.0
    %122 = vmatprep.subr.mxu0 0.0
    %123 = vmatpush2.msra.mxu0 0.0
    %124 = vmatprep.subr.mxu0 0.0
    %125 = vmatpush2.msra.mxu0 0.0
    %126 = vmatprep.subr.mxu0 0.0
    %127 = vmatpush2.msra.mxu0 0.0
    %128 = vmatprep.subr.mxu0 0.0
    %129 = vmatpush2.msra.mxu0 0.0
    %130 = vmatprep.subr.mxu0 0.0
    %131 = vmatpush2.msra.mxu0 0.0
    %132 = vmatprep.subr.mxu0 0.0
    %133 = vmatpush2.msra.mxu0 0.0
    %134 = vmatprep.subr.mxu0 0.0
    %135 = vmatpush2.msra.mxu0 0.0
    %136 = vmatprep.mubr.f32.mxu0 0.0
    %137 = vmatmul.mubr.f32.gmra.mxu0 %v67
    %v138 = vpop.f32.mrf.mxu0
    %v139 = vadd.f32 0.0, %v138
    %v140 = vpop.f32.mrf.mxu0
    %141 = vmatprep.mubr.f32.mxu0 0.0
    %142 = vmatmul.mubr.f32.gmra.mxu0 %v70
    %v143 = vpop.f32.mrf.mxu0
    %v144 = vadd.f32 0.0, %v143
    %v145 = vpop.f32.mrf.mxu0
    %146 = vdwg.mxu0
    %v147 = vmul.f32 %v139, 0.17677669
    %v148 = vmul.f32 %v144, 0.17677669
    %v149 = vlaneseq
    %v150 = vshrl.u32 %v149, 7
    %v151 = vlaneseq
    %v152 = vand.u32 %v151, 127
    %vm153 = vcmp.le.s32.totalorder %v152, %v150
    %155 = vrot.lane.b32.xlu0 %v139, 96
    %v156 = vpop.permute.xlu0 %155
    %vm157 = vcmask 64512
    %v159 = vsel %vm157, %v147, 0
    %v161 = vsel %vm157, %v156, 0
    %163 = vmatprep.subr.mxu0 0.0
    %164 = vmatpush1.xpose.msra.mxu0 0.0
    %165 = vmatprep.subr.mxu0 0.0
    %166 = vmatpush1.xpose.msra.mxu0 0.0
    %167 = vmatprep.subr.mxu0 0.0
    %168 = vmatpush1.xpose.msra.mxu0 0.0
    %169 = vmatprep.subr.mxu0 0.0
    %170 = vmatpush1.xpose.msra.mxu0 0.0
    %171 = vmatprep.subr.mxu0 0.0
    %172 = vmatpush1.xpose.msra.mxu0 0.0
    %173 = vmatprep.subr.mxu0 0.0
    %174 = vmatpush1.xpose.msra.mxu0 0.0
    %175 = vmatprep.subr.mxu0 0.0
    %176 = vmatpush1.xpose.msra.mxu0 0.0
    %177 = vmatprep.subr.mxu0 0.0
    %178 = vmatpush1.xpose.msra.mxu0 0.0
    %179 = vmatprep.subr.mxu0 0.0
    %180 = vmatpush1.xpose.msra.mxu0 0.0
    %181 = vmatprep.subr.mxu0 0.0
    %182 = vmatpush1.xpose.msra.mxu0 0.0
    %183 = vmatprep.subr.mxu0 0.0
    %184 = vmatpush1.xpose.msra.mxu0 0.0
    %185 = vmatprep.subr.mxu0 0.0
    %186 = vmatpush1.xpose.msra.mxu0 0.0
    %187 = vmatprep.subr.mxu0 0.0
    %188 = vmatpush1.xpose.msra.mxu0 0.0
    %189 = vmatprep.subr.mxu0 0.0
    %190 = vmatpush1.xpose.msra.mxu0 0.0
    %191 = vmatprep.subr.mxu0 0.0
    %192 = vmatpush1.xpose.msra.mxu0 0.0
    %193 = vmatprep.subr.mxu0 0.0
    %194 = vmatpush1.xpose.msra.mxu0 %v161
    %195 = vmatprep.subr.mxu0 0.0
    %196 = vmatpush2.xpose.msra.mxu0 0.0
    %197 = vmatprep.subr.mxu0 0.0
    %198 = vmatpush2.xpose.msra.mxu0 0.0
    %199 = vmatprep.subr.mxu0 0.0
    %200 = vmatpush2.xpose.msra.mxu0 0.0
    %201 = vmatprep.subr.mxu0 0.0
    %202 = vmatpush2.xpose.msra.mxu0 0.0
    %203 = vmatprep.subr.mxu0 0.0
    %204 = vmatpush2.xpose.msra.mxu0 0.0
    %205 = vmatprep.subr.mxu0 0.0
    %206 = vmatpush2.xpose.msra.mxu0 0.0
    %207 = vmatprep.subr.mxu0 0.0
    %208 = vmatpush2.xpose.msra.mxu0 0.0
    %209 = vmatprep.subr.mxu0 0.0
    %210 = vmatpush2.xpose.msra.mxu0 0.0
    %211 = vmatprep.subr.mxu0 0.0
    %212 = vmatpush2.xpose.msra.mxu0 0.0
    %213 = vmatprep.subr.mxu0 0.0
    %214 = vmatpush2.xpose.msra.mxu0 0.0
    %215 = vmatprep.subr.mxu0 0.0
    %216 = vmatpush2.xpose.msra.mxu0 0.0
    %217 = vmatprep.subr.mxu0 0.0
    %218 = vmatpush2.xpose.msra.mxu0 0.0
    %219 = vmatprep.subr.mxu0 0.0
    %220 = vmatpush2.xpose.msra.mxu0 0.0
    %221 = vmatprep.subr.mxu0 0.0
    %222 = vmatpush2.xpose.msra.mxu0 0.0
    %223 = vmatprep.subr.mxu0 0.0
    %224 = vmatpush2.xpose.msra.mxu0 0.0
    %225 = vmatprep.subr.mxu0 0.0
    %226 = vmatpush2.xpose.msra.mxu0 0.0
    %227 = vmatprep.mubr.f32.mxu0 0.0
    %228 = vmatmul.mubr.f32.gmra.mxu0 %v159
    %v229 = vpop.f32.mrf.mxu0
    %v230 = vadd.f32 0.0, %v229
    %v231 = vpop.f32.mrf.mxu0
    %232 = vdwg.mxu0
    %234 = vrot.lane.b32.xlu0 %v144, 96
    %v235 = vpop.permute.xlu0 %234
    %v237 = vsel %vm157, %v148, 0
    %v239 = vsel %vm157, %v235, 0
    %241 = vmatprep.subr.mxu0 0.0
    %242 = vmatpush1.xpose.msra.mxu0 0.0
    %243 = vmatprep.subr.mxu0 0.0
    %244 = vmatpush1.xpose.msra.mxu0 0.0
    %245 = vmatprep.subr.mxu0 0.0
    %246 = vmatpush1.xpose.msra.mxu0 0.0
    %247 = vmatprep.subr.mxu0 0.0
    %248 = vmatpush1.xpose.msra.mxu0 0.0
    %249 = vmatprep.subr.mxu0 0.0
    %250 = vmatpush1.xpose.msra.mxu0 0.0
    %251 = vmatprep.subr.mxu0 0.0
    %252 = vmatpush1.xpose.msra.mxu0 0.0
    %253 = vmatprep.subr.mxu0 0.0
    %254 = vmatpush1.xpose.msra.mxu0 0.0
    %255 = vmatprep.subr.mxu0 0.0
    %256 = vmatpush1.xpose.msra.mxu0 0.0
    %257 = vmatprep.subr.mxu0 0.0
    %258 = vmatpush1.xpose.msra.mxu0 0.0
    %259 = vmatprep.subr.mxu0 0.0
    %260 = vmatpush1.xpose.msra.mxu0 0.0
    %261 = vmatprep.subr.mxu0 0.0
    %262 = vmatpush1.xpose.msra.mxu0 0.0
    %263 = vmatprep.subr.mxu0 0.0
    %264 = vmatpush1.xpose.msra.mxu0 0.0
    %265 = vmatprep.subr.mxu0 0.0
    %266 = vmatpush1.xpose.msra.mxu0 0.0
    %267 = vmatprep.subr.mxu0 0.0
    %268 = vmatpush1.xpose.msra.mxu0 0.0
    %269 = vmatprep.subr.mxu0 0.0
    %270 = vmatpush1.xpose.msra.mxu0 0.0
    %271 = vmatprep.subr.mxu0 0.0
    %272 = vmatpush1.xpose.msra.mxu0 %v239
    %273 = vmatprep.subr.mxu0 0.0
    %274 = vmatpush2.xpose.msra.mxu0 0.0
    %275 = vmatprep.subr.mxu0 0.0
    %276 = vmatpush2.xpose.msra.mxu0 0.0
    %277 = vmatprep.subr.mxu0 0.0
    %278 = vmatpush2.xpose.msra.mxu0 0.0
    %279 = vmatprep.subr.mxu0 0.0
    %280 = vmatpush2.xpose.msra.mxu0 0.0
    %281 = vmatprep.subr.mxu0 0.0
    %282 = vmatpush2.xpose.msra.mxu0 0.0
    %283 = vmatprep.subr.mxu0 0.0
    %284 = vmatpush2.xpose.msra.mxu0 0.0
    %285 = vmatprep.subr.mxu0 0.0
    %286 = vmatpush2.xpose.msra.mxu0 0.0
    %287 = vmatprep.subr.mxu0 0.0
    %288 = vmatpush2.xpose.msra.mxu0 0.0
    %289 = vmatprep.subr.mxu0 0.0
    %290 = vmatpush2.xpose.msra.mxu0 0.0
    %291 = vmatprep.subr.mxu0 0.0
    %292 = vmatpush2.xpose.msra.mxu0 0.0
    %293 = vmatprep.subr.mxu0 0.0
    %294 = vmatpush2.xpose.msra.mxu0 0.0
    %295 = vmatprep.subr.mxu0 0.0
    %296 = vmatpush2.xpose.msra.mxu0 0.0
    %297 = vmatprep.subr.mxu0 0.0
    %298 = vmatpush2.xpose.msra.mxu0 0.0
    %299 = vmatprep.subr.mxu0 0.0
    %300 = vmatpush2.xpose.msra.mxu0 0.0
    %301 = vmatprep.subr.mxu0 0.0
    %302 = vmatpush2.xpose.msra.mxu0 0.0
    %303 = vmatprep.subr.mxu0 0.0
    %304 = vmatpush2.xpose.msra.mxu0 0.0
    %305 = vmatprep.mubr.f32.mxu0 0.0
    %306 = vmatmul.mubr.f32.gmra.mxu0 %v237
    %v307 = vpop.f32.mrf.mxu0
    %v308 = vadd.f32 0.0, %v307
    %v309 = vpop.f32.mrf.mxu0
    %310 = vdwg.mxu0
    %v311 = vsel %vm153, 1, 0
    %vm312 = vcmp.eq.s32.totalorder %v311, 1
    %v313 = vsel %vm312, %v230, -1e+30
    %v314 = vsel %vm312, %v308, -1e+30
    %v315 = vsel %vm157, %v313, -inf
    %316 = vmax.xlane.f32.xlu0 %v315
    %v317 = vpop.xlane.xlu0 %316
    %v318 = vsel %vm157, %v314, -inf
    %319 = vmax.xlane.f32.xlu0 %v318
    %v320 = vpop.xlane.xlu0 %319
    %v321 = vsub.f32 %v313, %v317
    %v322 = vsub.f32 %v314, %v320
    %v323 = vmul.f32 %v321, 1.442695
    %v324 = vpow.pop %v323
    %v325 = vmul.f32 %v322, 1.442695
    %v326 = vpow.pop %v325
    %v327 = vsel %vm157, %v324, 0.0
    %328 = vadd.xlane.f32.xlu0 %v327
    %v329 = vpop.xlane.xlu0 %328
    %v330 = vsel %vm157, %v326, 0.0
    %331 = vadd.xlane.f32.xlu0 %v330
    %v332 = vpop.xlane.xlu0 %331
    %v333 = vrcp.pop %v329
    %v334 = vrcp.pop %v332
    %v335 = vmul.f32 %v324, %v333
    %v336 = vmul.f32 %v326, %v334
    %337 = vrot.lane.b32.xlu0 %v139, 64
    %v338 = vpop.permute.xlu0 %337
    %v341 = vsel %vm157, %v335, 0
    %343 = vmatprep.subr.mxu0 0.0
    %344 = vmatpush1.msra.mxu0 0.0
    %345 = vmatprep.subr.mxu0 0.0
    %346 = vmatpush1.msra.mxu0 0.0
    %347 = vmatprep.subr.mxu0 0.0
    %348 = vmatpush1.msra.mxu0 0.0
    %349 = vmatprep.subr.mxu0 0.0
    %350 = vmatpush1.msra.mxu0 0.0
    %351 = vmatprep.subr.mxu0 0.0
    %352 = vmatpush1.msra.mxu0 0.0
    %353 = vmatprep.subr.mxu0 0.0
    %354 = vmatpush1.msra.mxu0 0.0
    %355 = vmatprep.subr.mxu0 0.0
    %356 = vmatpush1.msra.mxu0 0.0
    %357 = vmatprep.subr.mxu0 0.0
    %358 = vmatpush1.msra.mxu0 0.0
    %359 = vmatprep.subr.mxu0 0.0
    %360 = vmatpush1.msra.mxu0 0.0
    %361 = vmatprep.subr.mxu0 0.0
    %362 = vmatpush1.msra.mxu0 0.0
    %363 = vmatprep.subr.mxu0 0.0
    %364 = vmatpush1.msra.mxu0 0.0
    %365 = vmatprep.subr.mxu0 0.0
    %366 = vmatpush1.msra.mxu0 0.0
    %367 = vmatprep.subr.mxu0 0.0
    %368 = vmatpush1.msra.mxu0 0.0
    %369 = vmatprep.subr.mxu0 0.0
    %370 = vmatpush1.msra.mxu0 0.0
    %371 = vmatprep.subr.mxu0 0.0
    %372 = vmatpush1.msra.mxu0 0.0
    %373 = vmatprep.subr.mxu0 0.0
    %374 = vmatpush1.msra.mxu0 %v338
    %375 = vmatprep.subr.mxu0 0.0
    %376 = vmatpush2.msra.mxu0 0.0
    %377 = vmatprep.subr.mxu0 0.0
    %378 = vmatpush2.msra.mxu0 0.0
    %379 = vmatprep.subr.mxu0 0.0
    %380 = vmatpush2.msra.mxu0 0.0
    %381 = vmatprep.subr.mxu0 0.0
    %382 = vmatpush2.msra.mxu0 0.0
    %383 = vmatprep.subr.mxu0 0.0
    %384 = vmatpush2.msra.mxu0 0.0
    %385 = vmatprep.subr.mxu0 0.0
    %386 = vmatpush2.msra.mxu0 0.0
    %387 = vmatprep.subr.mxu0 0.0
    %388 = vmatpush2.msra.mxu0 0.0
    %389 = vmatprep.subr.mxu0 0.0
    %390 = vmatpush2.msra.mxu0 0.0
    %391 = vmatprep.subr.mxu0 0.0
    %392 = vmatpush2.msra.mxu0 0.0
    %393 = vmatprep.subr.mxu0 0.0
    %394 = vmatpush2.msra.mxu0 0.0
    %395 = vmatprep.subr.mxu0 0.0
    %396 = vmatpush2.msra.mxu0 0.0
    %397 = vmatprep.subr.mxu0 0.0
    %398 = vmatpush2.msra.mxu0 0.0
    %399 = vmatprep.subr.mxu0 0.0
    %400 = vmatpush2.msra.mxu0 0.0
    %401 = vmatprep.subr.mxu0 0.0
    %402 = vmatpush2.msra.mxu0 0.0
    %403 = vmatprep.subr.mxu0 0.0
    %404 = vmatpush2.msra.mxu0 0.0
    %405 = vmatprep.subr.mxu0 0.0
    %406 = vmatpush2.msra.mxu0 0.0
    %407 = vmatprep.mubr.f32.mxu0 0.0
    %408 = vmatmul.mubr.f32.gmra.mxu0 %v341
    %v409 = vpop.f32.mrf.mxu0
    %v410 = vadd.f32 0.0, %v409
    %v411 = vpop.f32.mrf.mxu0
    %412 = vdwg.mxu0
    %413 = vrot.lane.b32.xlu0 %v144, 64
    %v414 = vpop.permute.xlu0 %413
    %v417 = vsel %vm157, %v336, 0
    %419 = vmatprep.subr.mxu0 0.0
    %420 = vmatpush1.msra.mxu0 0.0
    %421 = vmatprep.subr.mxu0 0.0
    %422 = vmatpush1.msra.mxu0 0.0
    %423 = vmatprep.subr.mxu0 0.0
    %424 = vmatpush1.msra.mxu0 0.0
    %425 = vmatprep.subr.mxu0 0.0
    %426 = vmatpush1.msra.mxu0 0.0
    %427 = vmatprep.subr.mxu0 0.0
    %428 = vmatpush1.msra.mxu0 0.0
    %429 = vmatprep.subr.mxu0 0.0
    %430 = vmatpush1.msra.mxu0 0.0
    %431 = vmatprep.subr.mxu0 0.0
    %432 = vmatpush1.msra.mxu0 0.0
    %433 = vmatprep.subr.mxu0 0.0
    %434 = vmatpush1.msra.mxu0 0.0
    %435 = vmatprep.subr.mxu0 0.0
    %436 = vmatpush1.msra.mxu0 0.0
    %437 = vmatprep.subr.mxu0 0.0
    %438 = vmatpush1.msra.mxu0 0.0
    %439 = vmatprep.subr.mxu0 0.0
    %440 = vmatpush1.msra.mxu0 0.0
    %441 = vmatprep.subr.mxu0 0.0
    %442 = vmatpush1.msra.mxu0 0.0
    %443 = vmatprep.subr.mxu0 0.0
    %444 = vmatpush1.msra.mxu0 0.0
    %445 = vmatprep.subr.mxu0 0.0
    %446 = vmatpush1.msra.mxu0 0.0
    %447 = vmatprep.subr.mxu0 0.0
    %448 = vmatpush1.msra.mxu0 0.0
    %449 = vmatprep.subr.mxu0 0.0
    %450 = vmatpush1.msra.mxu0 %v414
    %451 = vmatprep.subr.mxu0 0.0
    %452 = vmatpush2.msra.mxu0 0.0
    %453 = vmatprep.subr.mxu0 0.0
    %454 = vmatpush2.msra.mxu0 0.0
    %455 = vmatprep.subr.mxu0 0.0
    %456 = vmatpush2.msra.mxu0 0.0
    %457 = vmatprep.subr.mxu0 0.0
    %458 = vmatpush2.msra.mxu0 0.0
    %459 = vmatprep.subr.mxu0 0.0
    %460 = vmatpush2.msra.mxu0 0.0
    %461 = vmatprep.subr.mxu0 0.0
    %462 = vmatpush2.msra.mxu0 0.0
    %463 = vmatprep.subr.mxu0 0.0
    %464 = vmatpush2.msra.mxu0 0.0
    %465 = vmatprep.subr.mxu0 0.0
    %466 = vmatpush2.msra.mxu0 0.0
    %467 = vmatprep.subr.mxu0 0.0
    %468 = vmatpush2.msra.mxu0 0.0
    %469 = vmatprep.subr.mxu0 0.0
    %470 = vmatpush2.msra.mxu0 0.0
    %471 = vmatprep.subr.mxu0 0.0
    %472 = vmatpush2.msra.mxu0 0.0
    %473 = vmatprep.subr.mxu0 0.0
    %474 = vmatpush2.msra.mxu0 0.0
    %475 = vmatprep.subr.mxu0 0.0
    %476 = vmatpush2.msra.mxu0 0.0
    %477 = vmatprep.subr.mxu0 0.0
    %478 = vmatpush2.msra.mxu0 0.0
    %479 = vmatprep.subr.mxu0 0.0
    %480 = vmatpush2.msra.mxu0 0.0
    %481 = vmatprep.subr.mxu0 0.0
    %482 = vmatpush2.msra.mxu0 0.0
    %483 = vmatprep.mubr.f32.mxu0 0.0
    %484 = vmatmul.mubr.f32.gmra.mxu0 %v417
    %v485 = vpop.f32.mrf.mxu0
    %v486 = vadd.f32 0.0, %v485
    %v487 = vpop.f32.mrf.mxu0
    %488 = vdwg.mxu0
    %489 = vst.msk [vmem:[#allocation2] sm:$0xff] %vm157, %v410
    %490 = vst.msk [vmem:[#allocation2 + $0x8] sm:$0xff] %vm157, %v486
    %491 = vrot.lane.b32.xlu0 %v147, 120
    %v492 = vpop.permute.xlu0 %491
    %493 = vrot.lane.b32.xlu0 %v139, 88
    %v494 = vpop.permute.xlu0 %493
    %v495 = vsel %vm157, %v492, 0
    %v497 = vsel %vm157, %v494, 0
    %499 = vmatprep.subr.mxu0 0.0
    %500 = vmatpush1.xpose.msra.mxu0 0.0
    %501 = vmatprep.subr.mxu0 0.0
    %502 = vmatpush1.xpose.msra.mxu0 0.0
    %503 = vmatprep.subr.mxu0 0.0
    %504 = vmatpush1.xpose.msra.mxu0 0.0
    %505 = vmatprep.subr.mxu0 0.0
    %506 = vmatpush1.xpose.msra.mxu0 0.0
    %507 = vmatprep.subr.mxu0 0.0
    %508 = vmatpush1.xpose.msra.mxu0 0.0
    %509 = vmatprep.subr.mxu0 0.0
    %510 = vmatpush1.xpose.msra.mxu0 0.0
    %511 = vmatprep.subr.mxu0 0.0
    %512 = vmatpush1.xpose.msra.mxu0 0.0
    %513 = vmatprep.subr.mxu0 0.0
    %514 = vmatpush1.xpose.msra.mxu0 0.0
    %515 = vmatprep.subr.mxu0 0.0
    %516 = vmatpush1.xpose.msra.mxu0 0.0
    %517 = vmatprep.subr.mxu0 0.0
    %518 = vmatpush1.xpose.msra.mxu0 0.0
    %519 = vmatprep.subr.mxu0 0.0
    %520 = vmatpush1.xpose.msra.mxu0 0.0
    %521 = vmatprep.subr.mxu0 0.0
    %522 = vmatpush1.xpose.msra.mxu0 0.0
    %523 = vmatprep.subr.mxu0 0.0
    %524 = vmatpush1.xpose.msra.mxu0 0.0
    %525 = vmatprep.subr.mxu0 0.0
    %526 = vmatpush1.xpose.msra.mxu0 0.0
    %527 = vmatprep.subr.mxu0 0.0
    %528 = vmatpush1.xpose.msra.mxu0 0.0
    %529 = vmatprep.subr.mxu0 0.0
    %530 = vmatpush1.xpose.msra.mxu0 %v497
    %531 = vmatprep.subr.mxu0 0.0
    %532 = vmatpush2.xpose.msra.mxu0 0.0
    %533 = vmatprep.subr.mxu0 0.0
    %534 = vmatpush2.xpose.msra.mxu0 0.0
    %535 = vmatprep.subr.mxu0 0.0
    %536 = vmatpush2.xpose.msra.mxu0 0.0
    %537 = vmatprep.subr.mxu0 0.0
    %538 = vmatpush2.xpose.msra.mxu0 0.0
    %539 = vmatprep.subr.mxu0 0.0
    %540 = vmatpush2.xpose.msra.mxu0 0.0
    %541 = vmatprep.subr.mxu0 0.0
    %542 = vmatpush2.xpose.msra.mxu0 0.0
    %543 = vmatprep.subr.mxu0 0.0
    %544 = vmatpush2.xpose.msra.mxu0 0.0
    %545 = vmatprep.subr.mxu0 0.0
    %546 = vmatpush2.xpose.msra.mxu0 0.0
    %547 = vmatprep.subr.mxu0 0.0
    %548 = vmatpush2.xpose.msra.mxu0 0.0
    %549 = vmatprep.subr.mxu0 0.0
    %550 = vmatpush2.xpose.msra.mxu0 0.0
    %551 = vmatprep.subr.mxu0 0.0
    %552 = vmatpush2.xpose.msra.mxu0 0.0
    %553 = vmatprep.subr.mxu0 0.0
    %554 = vmatpush2.xpose.msra.mxu0 0.0
    %555 = vmatprep.subr.mxu0 0.0
    %556 = vmatpush2.xpose.msra.mxu0 0.0
    %557 = vmatprep.subr.mxu0 0.0
    %558 = vmatpush2.xpose.msra.mxu0 0.0
    %559 = vmatprep.subr.mxu0 0.0
    %560 = vmatpush2.xpose.msra.mxu0 0.0
    %561 = vmatprep.subr.mxu0 0.0
    %562 = vmatpush2.xpose.msra.mxu0 0.0
    %563 = vmatprep.mubr.f32.mxu0 0.0
    %564 = vmatmul.mubr.f32.gmra.mxu0 %v495
    %v565 = vpop.f32.mrf.mxu0
    %v566 = vadd.f32 0.0, %v565
    %v567 = vpop.f32.mrf.mxu0
    %568 = vdwg.mxu0
    %569 = vrot.lane.b32.xlu0 %v148, 120
    %v570 = vpop.permute.xlu0 %569
    %571 = vrot.lane.b32.xlu0 %v144, 88
    %v572 = vpop.permute.xlu0 %571
    %v573 = vsel %vm157, %v570, 0
    %v575 = vsel %vm157, %v572, 0
    %577 = vmatprep.subr.mxu0 0.0
    %578 = vmatpush1.xpose.msra.mxu0 0.0
    %579 = vmatprep.subr.mxu0 0.0
    %580 = vmatpush1.xpose.msra.mxu0 0.0
    %581 = vmatprep.subr.mxu0 0.0
    %582 = vmatpush1.xpose.msra.mxu0 0.0
    %583 = vmatprep.subr.mxu0 0.0
    %584 = vmatpush1.xpose.msra.mxu0 0.0
    %585 = vmatprep.subr.mxu0 0.0
    %586 = vmatpush1.xpose.msra.mxu0 0.0
    %587 = vmatprep.subr.mxu0 0.0
    %588 = vmatpush1.xpose.msra.mxu0 0.0
    %589 = vmatprep.subr.mxu0 0.0
    %590 = vmatpush1.xpose.msra.mxu0 0.0
    %591 = vmatprep.subr.mxu0 0.0
    %592 = vmatpush1.xpose.msra.mxu0 0.0
    %593 = vmatprep.subr.mxu0 0.0
    %594 = vmatpush1.xpose.msra.mxu0 0.0
    %595 = vmatprep.subr.mxu0 0.0
    %596 = vmatpush1.xpose.msra.mxu0 0.0
    %597 = vmatprep.subr.mxu0 0.0
    %598 = vmatpush1.xpose.msra.mxu0 0.0
    %599 = vmatprep.subr.mxu0 0.0
    %600 = vmatpush1.xpose.msra.mxu0 0.0
    %601 = vmatprep.subr.mxu0 0.0
    %602 = vmatpush1.xpose.msra.mxu0 0.0
    %603 = vmatprep.subr.mxu0 0.0
    %604 = vmatpush1.xpose.msra.mxu0 0.0
    %605 = vmatprep.subr.mxu0 0.0
    %606 = vmatpush1.xpose.msra.mxu0 0.0
    %607 = vmatprep.subr.mxu0 0.0
    %608 = vmatpush1.xpose.msra.mxu0 %v575
    %609 = vmatprep.subr.mxu0 0.0
    %610 = vmatpush2.xpose.msra.mxu0 0.0
    %611 = vmatprep.subr.mxu0 0.0
    %612 = vmatpush2.xpose.msra.mxu0 0.0
    %613 = vmatprep.subr.mxu0 0.0
    %614 = vmatpush2.xpose.msra.mxu0 0.0
    %615 = vmatprep.subr.mxu0 0.0
    %616 = vmatpush2.xpose.msra.mxu0 0.0
    %617 = vmatprep.subr.mxu0 0.0
    %618 = vmatpush2.xpose.msra.mxu0 0.0
    %619 = vmatprep.subr.mxu0 0.0
    %620 = vmatpush2.xpose.msra.mxu0 0.0
    %621 = vmatprep.subr.mxu0 0.0
    %622 = vmatpush2.xpose.msra.mxu0 0.0
    %623 = vmatprep.subr.mxu0 0.0
    %624 = vmatpush2.xpose.msra.mxu0 0.0
    %625 = vmatprep.subr.mxu0 0.0
    %626 = vmatpush2.xpose.msra.mxu0 0.0
    %627 = vmatprep.subr.mxu0 0.0
    %628 = vmatpush2.xpose.msra.mxu0 0.0
    %629 = vmatprep.subr.mxu0 0.0
    %630 = vmatpush2.xpose.msra.mxu0 0.0
    %631 = vmatprep.subr.mxu0 0.0
    %632 = vmatpush2.xpose.msra.mxu0 0.0
    %633 = vmatprep.subr.mxu0 0.0
    %634 = vmatpush2.xpose.msra.mxu0 0.0
    %635 = vmatprep.subr.mxu0 0.0
    %636 = vmatpush2.xpose.msra.mxu0 0.0
    %637 = vmatprep.subr.mxu0 0.0
    %638 = vmatpush2.xpose.msra.mxu0 0.0
    %639 = vmatprep.subr.mxu0 0.0
    %640 = vmatpush2.xpose.msra.mxu0 0.0
    %641 = vmatprep.mubr.f32.mxu0 0.0
    %642 = vmatmul.mubr.f32.gmra.mxu0 %v573
    %v643 = vpop.f32.mrf.mxu0
    %v644 = vadd.f32 0.0, %v643
    %v645 = vpop.f32.mrf.mxu0
    %646 = vdwg.mxu0
    %v647 = vsel %vm312, %v566, -1e+30
    %v648 = vsel %vm312, %v644, -1e+30
    %v649 = vsel %vm157, %v647, -inf
    %650 = vmax.xlane.f32.xlu0 %v649
    %v651 = vpop.xlane.xlu0 %650
    %v652 = vsel %vm157, %v648, -inf
    %653 = vmax.xlane.f32.xlu0 %v652
    %v654 = vpop.xlane.xlu0 %653
    %v655 = vsub.f32 %v647, %v651
    %v656 = vsub.f32 %v648, %v654
    %v657 = vmul.f32 %v655, 1.442695
    %v658 = vpow.pop %v657
    %v659 = vmul.f32 %v656, 1.442695
    %v660 = vpow.pop %v659
    %v661 = vsel %vm157, %v658, 0.0
    %662 = vadd.xlane.f32.xlu0 %v661
    %v663 = vpop.xlane.xlu0 %662
    %v664 = vsel %vm157, %v660, 0.0
    %665 = vadd.xlane.f32.xlu0 %v664
    %v666 = vpop.xlane.xlu0 %665
    %v667 = vrcp.pop %v663
    %v668 = vrcp.pop %v666
    %v669 = vmul.f32 %v658, %v667
    %v670 = vmul.f32 %v660, %v668
    %671 = vrot.lane.b32.xlu0 %v139, 56
    %v672 = vpop.permute.xlu0 %671
    %v675 = vsel %vm157, %v669, 0
    %677 = vmatprep.subr.mxu0 0.0
    %678 = vmatpush1.msra.mxu0 0.0
    %679 = vmatprep.subr.mxu0 0.0
    %680 = vmatpush1.msra.mxu0 0.0
    %681 = vmatprep.subr.mxu0 0.0
    %682 = vmatpush1.msra.mxu0 0.0
    %683 = vmatprep.subr.mxu0 0.0
    %684 = vmatpush1.msra.mxu0 0.0
    %685 = vmatprep.subr.mxu0 0.0
    %686 = vmatpush1.msra.mxu0 0.0
    %687 = vmatprep.subr.mxu0 0.0
    %688 = vmatpush1.msra.mxu0 0.0
    %689 = vmatprep.subr.mxu0 0.0
    %690 = vmatpush1.msra.mxu0 0.0
    %691 = vmatprep.subr.mxu0 0.0
    %692 = vmatpush1.msra.mxu0 0.0
    %693 = vmatprep.subr.mxu0 0.0
    %694 = vmatpush1.msra.mxu0 0.0
    %695 = vmatprep.subr.mxu0 0.0
    %696 = vmatpush1.msra.mxu0 0.0
    %697 = vmatprep.subr.mxu0 0.0
    %698 = vmatpush1.msra.mxu0 0.0
    %699 = vmatprep.subr.mxu0 0.0
    %700 = vmatpush1.msra.mxu0 0.0
    %701 = vmatprep.subr.mxu0 0.0
    %702 = vmatpush1.msra.mxu0 0.0
    %703 = vmatprep.subr.mxu0 0.0
    %704 = vmatpush1.msra.mxu0 0.0
    %705 = vmatprep.subr.mxu0 0.0
    %706 = vmatpush1.msra.mxu0 0.0
    %707 = vmatprep.subr.mxu0 0.0
    %708 = vmatpush1.msra.mxu0 %v672
    %709 = vmatprep.subr.mxu0 0.0
    %710 = vmatpush2.msra.mxu0 0.0
    %711 = vmatprep.subr.mxu0 0.0
    %712 = vmatpush2.msra.mxu0 0.0
    %713 = vmatprep.subr.mxu0 0.0
    %714 = vmatpush2.msra.mxu0 0.0
    %715 = vmatprep.subr.mxu0 0.0
    %716 = vmatpush2.msra.mxu0 0.0
    %717 = vmatprep.subr.mxu0 0.0
    %718 = vmatpush2.msra.mxu0 0.0
    %719 = vmatprep.subr.mxu0 0.0
    %720 = vmatpush2.msra.mxu0 0.0
    %721 = vmatprep.subr.mxu0 0.0
    %722 = vmatpush2.msra.mxu0 0.0
    %723 = vmatprep.subr.mxu0 0.0
    %724 = vmatpush2.msra.mxu0 0.0
    %725 = vmatprep.subr.mxu0 0.0
    %726 = vmatpush2.msra.mxu0 0.0
    %727 = vmatprep.subr.mxu0 0.0
    %728 = vmatpush2.msra.mxu0 0.0
    %729 = vmatprep.subr.mxu0 0.0
    %730 = vmatpush2.msra.mxu0 0.0
    %731 = vmatprep.subr.mxu0 0.0
    %732 = vmatpush2.msra.mxu0 0.0
    %733 = vmatprep.subr.mxu0 0.0
    %734 = vmatpush2.msra.mxu0 0.0
    %735 = vmatprep.subr.mxu0 0.0
    %736 = vmatpush2.msra.mxu0 0.0
    %737 = vmatprep.subr.mxu0 0.0
    %738 = vmatpush2.msra.mxu0 0.0
    %739 = vmatprep.subr.mxu0 0.0
    %740 = vmatpush2.msra.mxu0 0.0
    %741 = vmatprep.mubr.f32.mxu0 0.0
    %742 = vmatmul.mubr.f32.gmra.mxu0 %v675
    %v743 = vpop.f32.mrf.mxu0
    %v744 = vadd.f32 0.0, %v743
    %v745 = vpop.f32.mrf.mxu0
    %746 = vdwg.mxu0
    %747 = vrot.lane.b32.xlu0 %v144, 56
    %v748 = vpop.permute.xlu0 %747
    %v751 = vsel %vm157, %v670, 0
    %753 = vmatprep.subr.mxu0 0.0
    %754 = vmatpush1.msra.mxu0 0.0
    %755 = vmatprep.subr.mxu0 0.0
    %756 = vmatpush1.msra.mxu0 0.0
    %757 = vmatprep.subr.mxu0 0.0
    %758 = vmatpush1.msra.mxu0 0.0
    %759 = vmatprep.subr.mxu0 0.0
    %760 = vmatpush1.msra.mxu0 0.0
    %761 = vmatprep.subr.mxu0 0.0
    %762 = vmatpush1.msra.mxu0 0.0
    %763 = vmatprep.subr.mxu0 0.0
    %764 = vmatpush1.msra.mxu0 0.0
    %765 = vmatprep.subr.mxu0 0.0
    %766 = vmatpush1.msra.mxu0 0.0
    %767 = vmatprep.subr.mxu0 0.0
    %768 = vmatpush1.msra.mxu0 0.0
    %769 = vmatprep.subr.mxu0 0.0
    %770 = vmatpush1.msra.mxu0 0.0
    %771 = vmatprep.subr.mxu0 0.0
    %772 = vmatpush1.msra.mxu0 0.0
    %773 = vmatprep.subr.mxu0 0.0
    %774 = vmatpush1.msra.mxu0 0.0
    %775 = vmatprep.subr.mxu0 0.0
    %776 = vmatpush1.msra.mxu0 0.0
    %777 = vmatprep.subr.mxu0 0.0
    %778 = vmatpush1.msra.mxu0 0.0
    %779 = vmatprep.subr.mxu0 0.0
    %780 = vmatpush1.msra.mxu0 0.0
    %781 = vmatprep.subr.mxu0 0.0
    %782 = vmatpush1.msra.mxu0 0.0
    %783 = vmatprep.subr.mxu0 0.0
    %784 = vmatpush1.msra.mxu0 %v748
    %785 = vmatprep.subr.mxu0 0.0
    %786 = vmatpush2.msra.mxu0 0.0
    %787 = vmatprep.subr.mxu0 0.0
    %788 = vmatpush2.msra.mxu0 0.0
    %789 = vmatprep.subr.mxu0 0.0
    %790 = vmatpush2.msra.mxu0 0.0
    %791 = vmatprep.subr.mxu0 0.0
    %792 = vmatpush2.msra.mxu0 0.0
    %793 = vmatprep.subr.mxu0 0.0
    %794 = vmatpush2.msra.mxu0 0.0
    %795 = vmatprep.subr.mxu0 0.0
    %796 = vmatpush2.msra.mxu0 0.0
    %797 = vmatprep.subr.mxu0 0.0
    %798 = vmatpush2.msra.mxu0 0.0
    %799 = vmatprep.subr.mxu0 0.0
    %800 = vmatpush2.msra.mxu0 0.0
    %801 = vmatprep.subr.mxu0 0.0
    %802 = vmatpush2.msra.mxu0 0.0
    %803 = vmatprep.subr.mxu0 0.0
    %804 = vmatpush2.msra.mxu0 0.0
    %805 = vmatprep.subr.mxu0 0.0
    %806 = vmatpush2.msra.mxu0 0.0
    %807 = vmatprep.subr.mxu0 0.0
    %808 = vmatpush2.msra.mxu0 0.0
    %809 = vmatprep.subr.mxu0 0.0
    %810 = vmatpush2.msra.mxu0 0.0
    %811 = vmatprep.subr.mxu0 0.0
    %812 = vmatpush2.msra.mxu0 0.0
    %813 = vmatprep.subr.mxu0 0.0
    %814 = vmatpush2.msra.mxu0 0.0
    %815 = vmatprep.subr.mxu0 0.0
    %816 = vmatpush2.msra.mxu0 0.0
    %817 = vmatprep.mubr.f32.mxu0 0.0
    %818 = vmatmul.mubr.f32.gmra.mxu0 %v751
    %v819 = vpop.f32.mrf.mxu0
    %v820 = vadd.f32 0.0, %v819
    %v821 = vpop.f32.mrf.mxu0
    %822 = vdwg.mxu0
    %825 = vrot.lane.b32.xlu0 %v744, 8
    %v826 = vpop.permute.xlu0 %825
    %827 = vrot.lane.b32.xlu0 %v820, 8
    %v828 = vpop.permute.xlu0 %827
    %vm831 = vcmask 130112
    %832 = vst.msk [vmem:[#allocation2] sm:$0xff] %vm831, %v826
    %833 = vst.msk [vmem:[#allocation2 + $0x8] sm:$0xff] %vm831, %v828
    %834 = vrot.lane.b32.xlu0 %v147, 112
    %v835 = vpop.permute.xlu0 %834
    %836 = vrot.lane.b32.xlu0 %v139, 80
    %v837 = vpop.permute.xlu0 %836
    %v838 = vsel %vm157, %v835, 0
    %v840 = vsel %vm157, %v837, 0
    %842 = vmatprep.subr.mxu0 0.0
    %843 = vmatpush1.xpose.msra.mxu0 0.0
    %844 = vmatprep.subr.mxu0 0.0
    %845 = vmatpush1.xpose.msra.mxu0 0.0
    %846 = vmatprep.subr.mxu0 0.0
    %847 = vmatpush1.xpose.msra.mxu0 0.0
    %848 = vmatprep.subr.mxu0 0.0
    %849 = vmatpush1.xpose.msra.mxu0 0.0
    %850 = vmatprep.subr.mxu0 0.0
    %851 = vmatpush1.xpose.msra.mxu0 0.0
    %852 = vmatprep.subr.mxu0 0.0
    %853 = vmatpush1.xpose.msra.mxu0 0.0
    %854 = vmatprep.subr.mxu0 0.0
    %855 = vmatpush1.xpose.msra.mxu0 0.0
    %856 = vmatprep.subr.mxu0 0.0
    %857 = vmatpush1.xpose.msra.mxu0 0.0
    %858 = vmatprep.subr.mxu0 0.0
    %859 = vmatpush1.xpose.msra.mxu0 0.0
    %860 = vmatprep.subr.mxu0 0.0
    %861 = vmatpush1.xpose.msra.mxu0 0.0
    %862 = vmatprep.subr.mxu0 0.0
    %863 = vmatpush1.xpose.msra.mxu0 0.0
    %864 = vmatprep.subr.mxu0 0.0
    %865 = vmatpush1.xpose.msra.mxu0 0.0
    %866 = vmatprep.subr.mxu0 0.0
    %867 = vmatpush1.xpose.msra.mxu0 0.0
    %868 = vmatprep.subr.mxu0 0.0
    %869 = vmatpush1.xpose.msra.mxu0 0.0
    %870 = vmatprep.subr.mxu0 0.0
    %871 = vmatpush1.xpose.msra.mxu0 0.0
    %872 = vmatprep.subr.mxu0 0.0
    %873 = vmatpush1.xpose.msra.mxu0 %v840
    %874 = vmatprep.subr.mxu0 0.0
    %875 = vmatpush2.xpose.msra.mxu0 0.0
    %876 = vmatprep.subr.mxu0 0.0
    %877 = vmatpush2.xpose.msra.mxu0 0.0
    %878 = vmatprep.subr.mxu0 0.0
    %879 = vmatpush2.xpose.msra.mxu0 0.0
    %880 = vmatprep.subr.mxu0 0.0
    %881 = vmatpush2.xpose.msra.mxu0 0.0
    %882 = vmatprep.subr.mxu0 0.0
    %883 = vmatpush2.xpose.msra.mxu0 0.0
    %884 = vmatprep.subr.mxu0 0.0
    %885 = vmatpush2.xpose.msra.mxu0 0.0
    %886 = vmatprep.subr.mxu0 0.0
    %887 = vmatpush2.xpose.msra.mxu0 0.0
    %888 = vmatprep.subr.mxu0 0.0
    %889 = vmatpush2.xpose.msra.mxu0 0.0
    %890 = vmatprep.subr.mxu0 0.0
    %891 = vmatpush2.xpose.msra.mxu0 0.0
    %892 = vmatprep.subr.mxu0 0.0
    %893 = vmatpush2.xpose.msra.mxu0 0.0
    %894 = vmatprep.subr.mxu0 0.0
    %895 = vmatpush2.xpose.msra.mxu0 0.0
    %896 = vmatprep.subr.mxu0 0.0
    %897 = vmatpush2.xpose.msra.mxu0 0.0
    %898 = vmatprep.subr.mxu0 0.0
    %899 = vmatpush2.xpose.msra.mxu0 0.0
    %900 = vmatprep.subr.mxu0 0.0
    %901 = vmatpush2.xpose.msra.mxu0 0.0
    %902 = vmatprep.subr.mxu0 0.0
    %903 = vmatpush2.xpose.msra.mxu0 0.0
    %904 = vmatprep.subr.mxu0 0.0
    %905 = vmatpush2.xpose.msra.mxu0 0.0
    %906 = vmatprep.mubr.f32.mxu0 0.0
    %907 = vmatmul.mubr.f32.gmra.mxu0 %v838
    %v908 = vpop.f32.mrf.mxu0
    %v909 = vadd.f32 0.0, %v908
    %v910 = vpop.f32.mrf.mxu0
    %911 = vdwg.mxu0
    %912 = vrot.lane.b32.xlu0 %v148, 112
    %v913 = vpop.permute.xlu0 %912
    %914 = vrot.lane.b32.xlu0 %v144, 80
    %v915 = vpop.permute.xlu0 %914
    %v916 = vsel %vm157, %v913, 0
    %v918 = vsel %vm157, %v915, 0
    %920 = vmatprep.subr.mxu0 0.0
    %921 = vmatpush1.xpose.msra.mxu0 0.0
    %922 = vmatprep.subr.mxu0 0.0
    %923 = vmatpush1.xpose.msra.mxu0 0.0
    %924 = vmatprep.subr.mxu0 0.0
    %925 = vmatpush1.xpose.msra.mxu0 0.0
    %926 = vmatprep.subr.mxu0 0.0
    %927 = vmatpush1.xpose.msra.mxu0 0.0
    %928 = vmatprep.subr.mxu0 0.0
    %929 = vmatpush1.xpose.msra.mxu0 0.0
    %930 = vmatprep.subr.mxu0 0.0
    %931 = vmatpush1.xpose.msra.mxu0 0.0
    %932 = vmatprep.subr.mxu0 0.0
    %933 = vmatpush1.xpose.msra.mxu0 0.0
    %934 = vmatprep.subr.mxu0 0.0
    %935 = vmatpush1.xpose.msra.mxu0 0.0
    %936 = vmatprep.subr.mxu0 0.0
    %937 = vmatpush1.xpose.msra.mxu0 0.0
    %938 = vmatprep.subr.mxu0 0.0
    %939 = vmatpush1.xpose.msra.mxu0 0.0
    %940 = vmatprep.subr.mxu0 0.0
    %941 = vmatpush1.xpose.msra.mxu0 0.0
    %942 = vmatprep.subr.mxu0 0.0
    %943 = vmatpush1.xpose.msra.mxu0 0.0
    %944 = vmatprep.subr.mxu0 0.0
    %945 = vmatpush1.xpose.msra.mxu0 0.0
    %946 = vmatprep.subr.mxu0 0.0
    %947 = vmatpush1.xpose.msra.mxu0 0.0
    %948 = vmatprep.subr.mxu0 0.0
    %949 = vmatpush1.xpose.msra.mxu0 0.0
    %950 = vmatprep.subr.mxu0 0.0
    %951 = vmatpush1.xpose.msra.mxu0 %v918
    %952 = vmatprep.subr.mxu0 0.0
    %953 = vmatpush2.xpose.msra.mxu0 0.0
    %954 = vmatprep.subr.mxu0 0.0
    %955 = vmatpush2.xpose.msra.mxu0 0.0
    %956 = vmatprep.subr.mxu0 0.0
    %957 = vmatpush2.xpose.msra.mxu0 0.0
    %958 = vmatprep.subr.mxu0 0.0
    %959 = vmatpush2.xpose.msra.mxu0 0.0
    %960 = vmatprep.subr.mxu0 0.0
    %961 = vmatpush2.xpose.msra.mxu0 0.0
    %962 = vmatprep.subr.mxu0 0.0
    %963 = vmatpush2.xpose.msra.mxu0 0.0
    %964 = vmatprep.subr.mxu0 0.0
    %965 = vmatpush2.xpose.msra.mxu0 0.0
    %966 = vmatprep.subr.mxu0 0.0
    %967 = vmatpush2.xpose.msra.mxu0 0.0
    %968 = vmatprep.subr.mxu0 0.0
    %969 = vmatpush2.xpose.msra.mxu0 0.0
    %970 = vmatprep.subr.mxu0 0.0
    %971 = vmatpush2.xpose.msra.mxu0 0.0
    %972 = vmatprep.subr.mxu0 0.0
    %973 = vmatpush2.xpose.msra.mxu0 0.0
    %974 = vmatprep.subr.mxu0 0.0
    %975 = vmatpush2.xpose.msra.mxu0 0.0
    %976 = vmatprep.subr.mxu0 0.0
    %977 = vmatpush2.xpose.msra.mxu0 0.0
    %978 = vmatprep.subr.mxu0 0.0
    %979 = vmatpush2.xpose.msra.mxu0 0.0
    %980 = vmatprep.subr.mxu0 0.0
    %981 = vmatpush2.xpose.msra.mxu0 0.0
    %982 = vmatprep.subr.mxu0 0.0
    %983 = vmatpush2.xpose.msra.mxu0 0.0
    %984 = vmatprep.mubr.f32.mxu0 0.0
    %985 = vmatmul.mubr.f32.gmra.mxu0 %v916
    %v986 = vpop.f32.mrf.mxu0
    %v987 = vadd.f32 0.0, %v986
    %v988 = vpop.f32.mrf.mxu0
    %989 = vdwg.mxu0
    %v990 = vsel %vm312, %v909, -1e+30
    %v991 = vsel %vm312, %v987, -1e+30
    %v992 = vsel %vm157, %v990, -inf
    %993 = vmax.xlane.f32.xlu0 %v992
    %v994 = vpop.xlane.xlu0 %993
    %v995 = vsel %vm157, %v991, -inf
    %996 = vmax.xlane.f32.xlu0 %v995
    %v997 = vpop.xlane.xlu0 %996
    %v998 = vsub.f32 %v990, %v994
    %v999 = vsub.f32 %v991, %v997
    %v1000 = vmul.f32 %v998, 1.442695
    %v1001 = vpow.pop %v1000
    %v1002 = vmul.f32 %v999, 1.442695
    %v1003 = vpow.pop %v1002
    %v1004 = vsel %vm157, %v1001, 0.0
    %1005 = vadd.xlane.f32.xlu0 %v1004
    %v1006 = vpop.xlane.xlu0 %1005
    %v1007 = vsel %vm157, %v1003, 0.0
    %1008 = vadd.xlane.f32.xlu0 %v1007
    %v1009 = vpop.xlane.xlu0 %1008
    %v1010 = vrcp.pop %v1006
    %v1011 = vrcp.pop %v1009
    %v1012 = vmul.f32 %v1001, %v1010
    %v1013 = vmul.f32 %v1003, %v1011
    %1014 = vrot.lane.b32.xlu0 %v139, 48
    %v1015 = vpop.permute.xlu0 %1014
    %v1018 = vsel %vm157, %v1012, 0
    %1020 = vmatprep.subr.mxu0 0.0
    %1021 = vmatpush1.msra.mxu0 0.0
    %1022 = vmatprep.subr.mxu0 0.0
    %1023 = vmatpush1.msra.mxu0 0.0
    %1024 = vmatprep.subr.mxu0 0.0
    %1025 = vmatpush1.msra.mxu0 0.0
    %1026 = vmatprep.subr.mxu0 0.0
    %1027 = vmatpush1.msra.mxu0 0.0
    %1028 = vmatprep.subr.mxu0 0.0
    %1029 = vmatpush1.msra.mxu0 0.0
    %1030 = vmatprep.subr.mxu0 0.0
    %1031 = vmatpush1.msra.mxu0 0.0
    %1032 = vmatprep.subr.mxu0 0.0
    %1033 = vmatpush1.msra.mxu0 0.0
    %1034 = vmatprep.subr.mxu0 0.0
    %1035 = vmatpush1.msra.mxu0 0.0
    %1036 = vmatprep.subr.mxu0 0.0
    %1037 = vmatpush1.msra.mxu0 0.0
    %1038 = vmatprep.subr.mxu0 0.0
    %1039 = vmatpush1.msra.mxu0 0.0
    %1040 = vmatprep.subr.mxu0 0.0
    %1041 = vmatpush1.msra.mxu0 0.0
    %1042 = vmatprep.subr.mxu0 0.0
    %1043 = vmatpush1.msra.mxu0 0.0
    %1044 = vmatprep.subr.mxu0 0.0
    %1045 = vmatpush1.msra.mxu0 0.0
    %1046 = vmatprep.subr.mxu0 0.0
    %1047 = vmatpush1.msra.mxu0 0.0
    %1048 = vmatprep.subr.mxu0 0.0
    %1049 = vmatpush1.msra.mxu0 0.0
    %1050 = vmatprep.subr.mxu0 0.0
    %1051 = vmatpush1.msra.mxu0 %v1015
    %1052 = vmatprep.subr.mxu0 0.0
    %1053 = vmatpush2.msra.mxu0 0.0
    %1054 = vmatprep.subr.mxu0 0.0
    %1055 = vmatpush2.msra.mxu0 0.0
    %1056 = vmatprep.subr.mxu0 0.0
    %1057 = vmatpush2.msra.mxu0 0.0
    %1058 = vmatprep.subr.mxu0 0.0
    %1059 = vmatpush2.msra.mxu0 0.0
    %1060 = vmatprep.subr.mxu0 0.0
    %1061 = vmatpush2.msra.mxu0 0.0
    %1062 = vmatprep.subr.mxu0 0.0
    %1063 = vmatpush2.msra.mxu0 0.0
    %1064 = vmatprep.subr.mxu0 0.0
    %1065 = vmatpush2.msra.mxu0 0.0
    %1066 = vmatprep.subr.mxu0 0.0
    %1067 = vmatpush2.msra.mxu0 0.0
    %1068 = vmatprep.subr.mxu0 0.0
    %1069 = vmatpush2.msra.mxu0 0.0
    %1070 = vmatprep.subr.mxu0 0.0
    %1071 = vmatpush2.msra.mxu0 0.0
    %1072 = vmatprep.subr.mxu0 0.0
    %1073 = vmatpush2.msra.mxu0 0.0
    %1074 = vmatprep.subr.mxu0 0.0
    %1075 = vmatpush2.msra.mxu0 0.0
    %1076 = vmatprep.subr.mxu0 0.0
    %1077 = vmatpush2.msra.mxu0 0.0
    %1078 = vmatprep.subr.mxu0 0.0
    %1079 = vmatpush2.msra.mxu0 0.0
    %1080 = vmatprep.subr.mxu0 0.0
    %1081 = vmatpush2.msra.mxu0 0.0
    %1082 = vmatprep.subr.mxu0 0.0
    %1083 = vmatpush2.msra.mxu0 0.0
    %1084 = vmatprep.mubr.f32.mxu0 0.0
    %1085 = vmatmul.mubr.f32.gmra.mxu0 %v1018
    %v1086 = vpop.f32.mrf.mxu0
    %v1087 = vadd.f32 0.0, %v1086
    %v1088 = vpop.f32.mrf.mxu0
    %1089 = vdwg.mxu0
    %1090 = vrot.lane.b32.xlu0 %v144, 48
    %v1091 = vpop.permute.xlu0 %1090
    %v1094 = vsel %vm157, %v1013, 0
    %1096 = vmatprep.subr.mxu0 0.0
    %1097 = vmatpush1.msra.mxu0 0.0
    %1098 = vmatprep.subr.mxu0 0.0
    %1099 = vmatpush1.msra.mxu0 0.0
    %1100 = vmatprep.subr.mxu0 0.0
    %1101 = vmatpush1.msra.mxu0 0.0
    %1102 = vmatprep.subr.mxu0 0.0
    %1103 = vmatpush1.msra.mxu0 0.0
    %1104 = vmatprep.subr.mxu0 0.0
    %1105 = vmatpush1.msra.mxu0 0.0
    %1106 = vmatprep.subr.mxu0 0.0
    %1107 = vmatpush1.msra.mxu0 0.0
    %1108 = vmatprep.subr.mxu0 0.0
    %1109 = vmatpush1.msra.mxu0 0.0
    %1110 = vmatprep.subr.mxu0 0.0
    %1111 = vmatpush1.msra.mxu0 0.0
    %1112 = vmatprep.subr.mxu0 0.0
    %1113 = vmatpush1.msra.mxu0 0.0
    %1114 = vmatprep.subr.mxu0 0.0
    %1115 = vmatpush1.msra.mxu0 0.0
    %1116 = vmatprep.subr.mxu0 0.0
    %1117 = vmatpush1.msra.mxu0 0.0
    %1118 = vmatprep.subr.mxu0 0.0
    %1119 = vmatpush1.msra.mxu0 0.0
    %1120 = vmatprep.subr.mxu0 0.0
    %1121 = vmatpush1.msra.mxu0 0.0
    %1122 = vmatprep.subr.mxu0 0.0
    %1123 = vmatpush1.msra.mxu0 0.0
    %1124 = vmatprep.subr.mxu0 0.0
    %1125 = vmatpush1.msra.mxu0 0.0
    %1126 = vmatprep.subr.mxu0 0.0
    %1127 = vmatpush1.msra.mxu0 %v1091
    %1128 = vmatprep.subr.mxu0 0.0
    %1129 = vmatpush2.msra.mxu0 0.0
    %1130 = vmatprep.subr.mxu0 0.0
    %1131 = vmatpush2.msra.mxu0 0.0
    %1132 = vmatprep.subr.mxu0 0.0
    %1133 = vmatpush2.msra.mxu0 0.0
    %1134 = vmatprep.subr.mxu0 0.0
    %1135 = vmatpush2.msra.mxu0 0.0
    %1136 = vmatprep.subr.mxu0 0.0
    %1137 = vmatpush2.msra.mxu0 0.0
    %1138 = vmatprep.subr.mxu0 0.0
    %1139 = vmatpush2.msra.mxu0 0.0
    %1140 = vmatprep.subr.mxu0 0.0
    %1141 = vmatpush2.msra.mxu0 0.0
    %1142 = vmatprep.subr.mxu0 0.0
    %1143 = vmatpush2.msra.mxu0 0.0
    %1144 = vmatprep.subr.mxu0 0.0
    %1145 = vmatpush2.msra.mxu0 0.0
    %1146 = vmatprep.subr.mxu0 0.0
    %1147 = vmatpush2.msra.mxu0 0.0
    %1148 = vmatprep.subr.mxu0 0.0
    %1149 = vmatpush2.msra.mxu0 0.0
    %1150 = vmatprep.subr.mxu0 0.0
    %1151 = vmatpush2.msra.mxu0 0.0
    %1152 = vmatprep.subr.mxu0 0.0
    %1153 = vmatpush2.msra.mxu0 0.0
    %1154 = vmatprep.subr.mxu0 0.0
    %1155 = vmatpush2.msra.mxu0 0.0
    %1156 = vmatprep.subr.mxu0 0.0
    %1157 = vmatpush2.msra.mxu0 0.0
    %1158 = vmatprep.subr.mxu0 0.0
    %1159 = vmatpush2.msra.mxu0 0.0
    %1160 = vmatprep.mubr.f32.mxu0 0.0
    %1161 = vmatmul.mubr.f32.gmra.mxu0 %v1094
    %v1162 = vpop.f32.mrf.mxu0
    %v1163 = vadd.f32 0.0, %v1162
    %v1164 = vpop.f32.mrf.mxu0
    %1165 = vdwg.mxu0
    %1168 = vrot.lane.b32.xlu0 %v1087, 16
    %v1169 = vpop.permute.xlu0 %1168
    %1170 = vrot.lane.b32.xlu0 %v1163, 16
    %v1171 = vpop.permute.xlu0 %1170
    %vm1174 = vcmask 195712
    %1175 = vst.msk [vmem:[#allocation2] sm:$0xff] %vm1174, %v1169
    %1176 = vst.msk [vmem:[#allocation2 + $0x8] sm:$0xff] %vm1174, %v1171
    %1177 = vrot.lane.b32.xlu0 %v147, 104
    %v1178 = vpop.permute.xlu0 %1177
    %1179 = vrot.lane.b32.xlu0 %v139, 72
    %v1180 = vpop.permute.xlu0 %1179
    %v1181 = vsel %vm157, %v1178, 0
    %v1183 = vsel %vm157, %v1180, 0
    %1185 = vmatprep.subr.mxu0 0.0
    %1186 = vmatpush1.xpose.msra.mxu0 0.0
    %1187 = vmatprep.subr.mxu0 0.0
    %1188 = vmatpush1.xpose.msra.mxu0 0.0
    %1189 = vmatprep.subr.mxu0 0.0
    %1190 = vmatpush1.xpose.msra.mxu0 0.0
    %1191 = vmatprep.subr.mxu0 0.0
    %1192 = vmatpush1.xpose.msra.mxu0 0.0
    %1193 = vmatprep.subr.mxu0 0.0
    %1194 = vmatpush1.xpose.msra.mxu0 0.0
    %1195 = vmatprep.subr.mxu0 0.0
    %1196 = vmatpush1.xpose.msra.mxu0 0.0
    %1197 = vmatprep.subr.mxu0 0.0
    %1198 = vmatpush1.xpose.msra.mxu0 0.0
    %1199 = vmatprep.subr.mxu0 0.0
    %1200 = vmatpush1.xpose.msra.mxu0 0.0
    %1201 = vmatprep.subr.mxu0 0.0
    %1202 = vmatpush1.xpose.msra.mxu0 0.0
    %1203 = vmatprep.subr.mxu0 0.0
    %1204 = vmatpush1.xpose.msra.mxu0 0.0
    %1205 = vmatprep.subr.mxu0 0.0
    %1206 = vmatpush1.xpose.msra.mxu0 0.0
    %1207 = vmatprep.subr.mxu0 0.0
    %1208 = vmatpush1.xpose.msra.mxu0 0.0
    %1209 = vmatprep.subr.mxu0 0.0
    %1210 = vmatpush1.xpose.msra.mxu0 0.0
    %1211 = vmatprep.subr.mxu0 0.0
    %1212 = vmatpush1.xpose.msra.mxu0 0.0
    %1213 = vmatprep.subr.mxu0 0.0
    %1214 = vmatpush1.xpose.msra.mxu0 0.0
    %1215 = vmatprep.subr.mxu0 0.0
    %1216 = vmatpush1.xpose.msra.mxu0 %v1183
    %1217 = vmatprep.subr.mxu0 0.0
    %1218 = vmatpush2.xpose.msra.mxu0 0.0
    %1219 = vmatprep.subr.mxu0 0.0
    %1220 = vmatpush2.xpose.msra.mxu0 0.0
    %1221 = vmatprep.subr.mxu0 0.0
    %1222 = vmatpush2.xpose.msra.mxu0 0.0
    %1223 = vmatprep.subr.mxu0 0.0
    %1224 = vmatpush2.xpose.msra.mxu0 0.0
    %1225 = vmatprep.subr.mxu0 0.0
    %1226 = vmatpush2.xpose.msra.mxu0 0.0
    %1227 = vmatprep.subr.mxu0 0.0
    %1228 = vmatpush2.xpose.msra.mxu0 0.0
    %1229 = vmatprep.subr.mxu0 0.0
    %1230 = vmatpush2.xpose.msra.mxu0 0.0
    %1231 = vmatprep.subr.mxu0 0.0
    %1232 = vmatpush2.xpose.msra.mxu0 0.0
    %1233 = vmatprep.subr.mxu0 0.0
    %1234 = vmatpush2.xpose.msra.mxu0 0.0
    %1235 = vmatprep.subr.mxu0 0.0
    %1236 = vmatpush2.xpose.msra.mxu0 0.0
    %1237 = vmatprep.subr.mxu0 0.0
    %1238 = vmatpush2.xpose.msra.mxu0 0.0
    %1239 = vmatprep.subr.mxu0 0.0
    %1240 = vmatpush2.xpose.msra.mxu0 0.0
    %1241 = vmatprep.subr.mxu0 0.0
    %1242 = vmatpush2.xpose.msra.mxu0 0.0
    %1243 = vmatprep.subr.mxu0 0.0
    %1244 = vmatpush2.xpose.msra.mxu0 0.0
    %1245 = vmatprep.subr.mxu0 0.0
    %1246 = vmatpush2.xpose.msra.mxu0 0.0
    %1247 = vmatprep.subr.mxu0 0.0
    %1248 = vmatpush2.xpose.msra.mxu0 0.0
    %1249 = vmatprep.mubr.f32.mxu0 0.0
    %1250 = vmatmul.mubr.f32.gmra.mxu0 %v1181
    %v1251 = vpop.f32.mrf.mxu0
    %v1252 = vadd.f32 0.0, %v1251
    %v1253 = vpop.f32.mrf.mxu0
    %1254 = vdwg.mxu0
    %1255 = vrot.lane.b32.xlu0 %v148, 104
    %v1256 = vpop.permute.xlu0 %1255
    %1257 = vrot.lane.b32.xlu0 %v144, 72
    %v1258 = vpop.permute.xlu0 %1257
    %v1259 = vsel %vm157, %v1256, 0
    %v1261 = vsel %vm157, %v1258, 0
    %1263 = vmatprep.subr.mxu0 0.0
    %1264 = vmatpush1.xpose.msra.mxu0 0.0
    %1265 = vmatprep.subr.mxu0 0.0
    %1266 = vmatpush1.xpose.msra.mxu0 0.0
    %1267 = vmatprep.subr.mxu0 0.0
    %1268 = vmatpush1.xpose.msra.mxu0 0.0
    %1269 = vmatprep.subr.mxu0 0.0
    %1270 = vmatpush1.xpose.msra.mxu0 0.0
    %1271 = vmatprep.subr.mxu0 0.0
    %1272 = vmatpush1.xpose.msra.mxu0 0.0
    %1273 = vmatprep.subr.mxu0 0.0
    %1274 = vmatpush1.xpose.msra.mxu0 0.0
    %1275 = vmatprep.subr.mxu0 0.0
    %1276 = vmatpush1.xpose.msra.mxu0 0.0
    %1277 = vmatprep.subr.mxu0 0.0
    %1278 = vmatpush1.xpose.msra.mxu0 0.0
    %1279 = vmatprep.subr.mxu0 0.0
    %1280 = vmatpush1.xpose.msra.mxu0 0.0
    %1281 = vmatprep.subr.mxu0 0.0
    %1282 = vmatpush1.xpose.msra.mxu0 0.0
    %1283 = vmatprep.subr.mxu0 0.0
    %1284 = vmatpush1.xpose.msra.mxu0 0.0
    %1285 = vmatprep.subr.mxu0 0.0
    %1286 = vmatpush1.xpose.msra.mxu0 0.0
    %1287 = vmatprep.subr.mxu0 0.0
    %1288 = vmatpush1.xpose.msra.mxu0 0.0
    %1289 = vmatprep.subr.mxu0 0.0
    %1290 = vmatpush1.xpose.msra.mxu0 0.0
    %1291 = vmatprep.subr.mxu0 0.0
    %1292 = vmatpush1.xpose.msra.mxu0 0.0
    %1293 = vmatprep.subr.mxu0 0.0
    %1294 = vmatpush1.xpose.msra.mxu0 %v1261
    %1295 = vmatprep.subr.mxu0 0.0
    %1296 = vmatpush2.xpose.msra.mxu0 0.0
    %1297 = vmatprep.subr.mxu0 0.0
    %1298 = vmatpush2.xpose.msra.mxu0 0.0
    %1299 = vmatprep.subr.mxu0 0.0
    %1300 = vmatpush2.xpose.msra.mxu0 0.0
    %1301 = vmatprep.subr.mxu0 0.0
    %1302 = vmatpush2.xpose.msra.mxu0 0.0
    %1303 = vmatprep.subr.mxu0 0.0
    %1304 = vmatpush2.xpose.msra.mxu0 0.0
    %1305 = vmatprep.subr.mxu0 0.0
    %1306 = vmatpush2.xpose.msra.mxu0 0.0
    %1307 = vmatprep.subr.mxu0 0.0
    %1308 = vmatpush2.xpose.msra.mxu0 0.0
    %1309 = vmatprep.subr.mxu0 0.0
    %1310 = vmatpush2.xpose.msra.mxu0 0.0
    %1311 = vmatprep.subr.mxu0 0.0
    %1312 = vmatpush2.xpose.msra.mxu0 0.0
    %1313 = vmatprep.subr.mxu0 0.0
    %1314 = vmatpush2.xpose.msra.mxu0 0.0
    %1315 = vmatprep.subr.mxu0 0.0
    %1316 = vmatpush2.xpose.msra.mxu0 0.0
    %1317 = vmatprep.subr.mxu0 0.0
    %1318 = vmatpush2.xpose.msra.mxu0 0.0
    %1319 = vmatprep.subr.mxu0 0.0
    %1320 = vmatpush2.xpose.msra.mxu0 0.0
    %1321 = vmatprep.subr.mxu0 0.0
    %1322 = vmatpush2.xpose.msra.mxu0 0.0
    %1323 = vmatprep.subr.mxu0 0.0
    %1324 = vmatpush2.xpose.msra.mxu0 0.0
    %1325 = vmatprep.subr.mxu0 0.0
    %1326 = vmatpush2.xpose.msra.mxu0 0.0
    %1327 = vmatprep.mubr.f32.mxu0 0.0
    %1328 = vmatmul.mubr.f32.gmra.mxu0 %v1259
    %v1329 = vpop.f32.mrf.mxu0
    %v1330 = vadd.f32 0.0, %v1329
    %v1331 = vpop.f32.mrf.mxu0
    %1332 = vdwg.mxu0
    %v1333 = vsel %vm312, %v1252, -1e+30
    %v1334 = vsel %vm312, %v1330, -1e+30
    %v1335 = vsel %vm157, %v1333, -inf
    %1336 = vmax.xlane.f32.xlu0 %v1335
    %v1337 = vpop.xlane.xlu0 %1336
    %v1338 = vsel %vm157, %v1334, -inf
    %1339 = vmax.xlane.f32.xlu0 %v1338
    %v1340 = vpop.xlane.xlu0 %1339
    %v1341 = vsub.f32 %v1333, %v1337
    %v1342 = vsub.f32 %v1334, %v1340
    %v1343 = vmul.f32 %v1341, 1.442695
    %v1344 = vpow.pop %v1343
    %v1345 = vmul.f32 %v1342, 1.442695
    %v1346 = vpow.pop %v1345
    %v1347 = vsel %vm157, %v1344, 0.0
    %1348 = vadd.xlane.f32.xlu0 %v1347
    %v1349 = vpop.xlane.xlu0 %1348
    %v1350 = vsel %vm157, %v1346, 0.0
    %1351 = vadd.xlane.f32.xlu0 %v1350
    %v1352 = vpop.xlane.xlu0 %1351
    %v1353 = vrcp.pop %v1349
    %v1354 = vrcp.pop %v1352
    %v1355 = vmul.f32 %v1344, %v1353
    %v1356 = vmul.f32 %v1346, %v1354
    %1357 = vrot.lane.b32.xlu0 %v139, 40
    %v1358 = vpop.permute.xlu0 %1357
    %v1361 = vsel %vm157, %v1355, 0
    %1363 = vmatprep.subr.mxu0 0.0
    %1364 = vmatpush1.msra.mxu0 0.0
    %1365 = vmatprep.subr.mxu0 0.0
    %1366 = vmatpush1.msra.mxu0 0.0
    %1367 = vmatprep.subr.mxu0 0.0
    %1368 = vmatpush1.msra.mxu0 0.0
    %1369 = vmatprep.subr.mxu0 0.0
    %1370 = vmatpush1.msra.mxu0 0.0
    %1371 = vmatprep.subr.mxu0 0.0
    %1372 = vmatpush1.msra.mxu0 0.0
    %1373 = vmatprep.subr.mxu0 0.0
    %1374 = vmatpush1.msra.mxu0 0.0
    %1375 = vmatprep.subr.mxu0 0.0
    %1376 = vmatpush1.msra.mxu0 0.0
    %1377 = vmatprep.subr.mxu0 0.0
    %1378 = vmatpush1.msra.mxu0 0.0
    %1379 = vmatprep.subr.mxu0 0.0
    %1380 = vmatpush1.msra.mxu0 0.0
    %1381 = vmatprep.subr.mxu0 0.0
    %1382 = vmatpush1.msra.mxu0 0.0
    %1383 = vmatprep.subr.mxu0 0.0
    %1384 = vmatpush1.msra.mxu0 0.0
    %1385 = vmatprep.subr.mxu0 0.0
    %1386 = vmatpush1.msra.mxu0 0.0
    %1387 = vmatprep.subr.mxu0 0.0
    %1388 = vmatpush1.msra.mxu0 0.0
    %1389 = vmatprep.subr.mxu0 0.0
    %1390 = vmatpush1.msra.mxu0 0.0
    %1391 = vmatprep.subr.mxu0 0.0
    %1392 = vmatpush1.msra.mxu0 0.0
    %1393 = vmatprep.subr.mxu0 0.0
    %1394 = vmatpush1.msra.mxu0 %v1358
    %1395 = vmatprep.subr.mxu0 0.0
    %1396 = vmatpush2.msra.mxu0 0.0
    %1397 = vmatprep.subr.mxu0 0.0
    %1398 = vmatpush2.msra.mxu0 0.0
    %1399 = vmatprep.subr.mxu0 0.0
    %1400 = vmatpush2.msra.mxu0 0.0
    %1401 = vmatprep.subr.mxu0 0.0
    %1402 = vmatpush2.msra.mxu0 0.0
    %1403 = vmatprep.subr.mxu0 0.0
    %1404 = vmatpush2.msra.mxu0 0.0
    %1405 = vmatprep.subr.mxu0 0.0
    %1406 = vmatpush2.msra.mxu0 0.0
    %1407 = vmatprep.subr.mxu0 0.0
    %1408 = vmatpush2.msra.mxu0 0.0
    %1409 = vmatprep.subr.mxu0 0.0
    %1410 = vmatpush2.msra.mxu0 0.0
    %1411 = vmatprep.subr.mxu0 0.0
    %1412 = vmatpush2.msra.mxu0 0.0
    %1413 = vmatprep.subr.mxu0 0.0
    %1414 = vmatpush2.msra.mxu0 0.0
    %1415 = vmatprep.subr.mxu0 0.0
    %1416 = vmatpush2.msra.mxu0 0.0
    %1417 = vmatprep.subr.mxu0 0.0
    %1418 = vmatpush2.msra.mxu0 0.0
    %1419 = vmatprep.subr.mxu0 0.0
    %1420 = vmatpush2.msra.mxu0 0.0
    %1421 = vmatprep.subr.mxu0 0.0
    %1422 = vmatpush2.msra.mxu0 0.0
    %1423 = vmatprep.subr.mxu0 0.0
    %1424 = vmatpush2.msra.mxu0 0.0
    %1425 = vmatprep.subr.mxu0 0.0
    %1426 = vmatpush2.msra.mxu0 0.0
    %1427 = vmatprep.mubr.f32.mxu0 0.0
    %1428 = vmatmul.mubr.f32.gmra.mxu0 %v1361
    %v1429 = vpop.f32.mrf.mxu0
    %v1430 = vadd.f32 0.0, %v1429
    %v1431 = vpop.f32.mrf.mxu0
    %1432 = vdwg.mxu0
    %1433 = vrot.lane.b32.xlu0 %v144, 40
    %v1434 = vpop.permute.xlu0 %1433
    %v1437 = vsel %vm157, %v1356, 0
    %1439 = vmatprep.subr.mxu0 0.0
    %1440 = vmatpush1.msra.mxu0 0.0
    %1441 = vmatprep.subr.mxu0 0.0
    %1442 = vmatpush1.msra.mxu0 0.0
    %1443 = vmatprep.subr.mxu0 0.0
    %1444 = vmatpush1.msra.mxu0 0.0
    %1445 = vmatprep.subr.mxu0 0.0
    %1446 = vmatpush1.msra.mxu0 0.0
    %1447 = vmatprep.subr.mxu0 0.0
    %1448 = vmatpush1.msra.mxu0 0.0
    %1449 = vmatprep.subr.mxu0 0.0
    %1450 = vmatpush1.msra.mxu0 0.0
    %1451 = vmatprep.subr.mxu0 0.0
    %1452 = vmatpush1.msra.mxu0 0.0
    %1453 = vmatprep.subr.mxu0 0.0
    %1454 = vmatpush1.msra.mxu0 0.0
    %1455 = vmatprep.subr.mxu0 0.0
    %1456 = vmatpush1.msra.mxu0 0.0
    %1457 = vmatprep.subr.mxu0 0.0
    %1458 = vmatpush1.msra.mxu0 0.0
    %1459 = vmatprep.subr.mxu0 0.0
    %1460 = vmatpush1.msra.mxu0 0.0
    %1461 = vmatprep.subr.mxu0 0.0
    %1462 = vmatpush1.msra.mxu0 0.0
    %1463 = vmatprep.subr.mxu0 0.0
    %1464 = vmatpush1.msra.mxu0 0.0
    %1465 = vmatprep.subr.mxu0 0.0
    %1466 = vmatpush1.msra.mxu0 0.0
    %1467 = vmatprep.subr.mxu0 0.0
    %1468 = vmatpush1.msra.mxu0 0.0
    %1469 = vmatprep.subr.mxu0 0.0
    %1470 = vmatpush1.msra.mxu0 %v1434
    %1471 = vmatprep.subr.mxu0 0.0
    %1472 = vmatpush2.msra.mxu0 0.0
    %1473 = vmatprep.subr.mxu0 0.0
    %1474 = vmatpush2.msra.mxu0 0.0
    %1475 = vmatprep.subr.mxu0 0.0
    %1476 = vmatpush2.msra.mxu0 0.0
    %1477 = vmatprep.subr.mxu0 0.0
    %1478 = vmatpush2.msra.mxu0 0.0
    %1479 = vmatprep.subr.mxu0 0.0
    %1480 = vmatpush2.msra.mxu0 0.0
    %1481 = vmatprep.subr.mxu0 0.0
    %1482 = vmatpush2.msra.mxu0 0.0
    %1483 = vmatprep.subr.mxu0 0.0
    %1484 = vmatpush2.msra.mxu0 0.0
    %1485 = vmatprep.subr.mxu0 0.0
    %1486 = vmatpush2.msra.mxu0 0.0
    %1487 = vmatprep.subr.mxu0 0.0
    %1488 = vmatpush2.msra.mxu0 0.0
    %1489 = vmatprep.subr.mxu0 0.0
    %1490 = vmatpush2.msra.mxu0 0.0
    %1491 = vmatprep.subr.mxu0 0.0
    %1492 = vmatpush2.msra.mxu0 0.0
    %1493 = vmatprep.subr.mxu0 0.0
    %1494 = vmatpush2.msra.mxu0 0.0
    %1495 = vmatprep.subr.mxu0 0.0
    %1496 = vmatpush2.msra.mxu0 0.0
    %1497 = vmatprep.subr.mxu0 0.0
    %1498 = vmatpush2.msra.mxu0 0.0
    %1499 = vmatprep.subr.mxu0 0.0
    %1500 = vmatpush2.msra.mxu0 0.0
    %1501 = vmatprep.subr.mxu0 0.0
    %1502 = vmatpush2.msra.mxu0 0.0
    %1503 = vmatprep.mubr.f32.mxu0 0.0
    %1504 = vmatmul.mubr.f32.gmra.mxu0 %v1437
    %v1505 = vpop.f32.mrf.mxu0
    %v1506 = vadd.f32 0.0, %v1505
    %v1507 = vpop.f32.mrf.mxu0
    %1508 = vdwg.mxu0
    %1511 = vrot.lane.b32.xlu0 %v1430, 24
    %v1512 = vpop.permute.xlu0 %1511
    %1513 = vrot.lane.b32.xlu0 %v1506, 24
    %v1514 = vpop.permute.xlu0 %1513
    %vm1517 = vcmask 261312
    %1518 = vst.msk [vmem:[#allocation2] sm:$0xff] %vm1517, %v1512
    %1519 = vst.msk [vmem:[#allocation2 + $0x8] sm:$0xff] %vm1517, %v1514
    %v1520 = vld [vmem:[#allocation2] sm:$0xff]
    %v1521 = vld [vmem:[#allocation2 + $0x8] sm:$0xff]
    %v1522 = vld [vmem:[#allocation8] sm:$0xff]
    %v1523 = vld [vmem:[#allocation8 + $0x8] sm:$0xff]
    %v1524 = vld [vmem:[#allocation8 + $0x10] sm:$0xff]
    %v1525 = vld [vmem:[#allocation8 + $0x18] sm:$0xff]
    %v1526 = vld [vmem:[%s3] sm:$0x1]
    %v1528 = vlaneseq
    %v1529 = vshrl.u32 %v1528, 7
    %v1530 = vsub.s32 0, %v1529
    %v1531 = vrot.slane %v1526, %v1530
    %v1534 = vsel %vm65, %v1520, 0
    %v1537 = vsel %vm65, %v1521, 0
    %1539 = vmatprep.subr.mxu0 0.0
    %1540 = vmatpush1.msra.mxu0 0.0
    %1541 = vmatprep.subr.mxu0 0.0
    %1542 = vmatpush1.msra.mxu0 0.0
    %1543 = vmatprep.subr.mxu0 0.0
    %1544 = vmatpush1.msra.mxu0 0.0
    %1545 = vmatprep.subr.mxu0 0.0
    %1546 = vmatpush1.msra.mxu0 0.0
    %1547 = vmatprep.subr.mxu0 0.0
    %1548 = vmatpush1.msra.mxu0 0.0
    %1549 = vmatprep.subr.mxu0 0.0
    %1550 = vmatpush1.msra.mxu0 0.0
    %1551 = vmatprep.subr.mxu0 0.0
    %1552 = vmatpush1.msra.mxu0 0.0
    %1553 = vmatprep.subr.mxu0 0.0
    %1554 = vmatpush1.msra.mxu0 0.0
    %1555 = vmatprep.subr.mxu0 0.0
    %1556 = vmatpush1.msra.mxu0 0.0
    %1557 = vmatprep.subr.mxu0 0.0
    %1558 = vmatpush1.msra.mxu0 0.0
    %1559 = vmatprep.subr.mxu0 0.0
    %1560 = vmatpush1.msra.mxu0 0.0
    %1561 = vmatprep.subr.mxu0 0.0
    %1562 = vmatpush1.msra.mxu0 0.0
    %1563 = vmatprep.subr.mxu0 0.0
    %1564 = vmatpush1.msra.mxu0 %v1525
    %1565 = vmatprep.subr.mxu0 0.0
    %1566 = vmatpush1.msra.mxu0 %v1524
    %1567 = vmatprep.subr.mxu0 0.0
    %1568 = vmatpush1.msra.mxu0 %v1523
    %1569 = vmatprep.subr.mxu0 0.0
    %1570 = vmatpush1.msra.mxu0 %v1522
    %1571 = vmatprep.subr.mxu0 0.0
    %1572 = vmatpush2.msra.mxu0 0.0
    %1573 = vmatprep.subr.mxu0 0.0
    %1574 = vmatpush2.msra.mxu0 0.0
    %1575 = vmatprep.subr.mxu0 0.0
    %1576 = vmatpush2.msra.mxu0 0.0
    %1577 = vmatprep.subr.mxu0 0.0
    %1578 = vmatpush2.msra.mxu0 0.0
    %1579 = vmatprep.subr.mxu0 0.0
    %1580 = vmatpush2.msra.mxu0 0.0
    %1581 = vmatprep.subr.mxu0 0.0
    %1582 = vmatpush2.msra.mxu0 0.0
    %1583 = vmatprep.subr.mxu0 0.0
    %1584 = vmatpush2.msra.mxu0 0.0
    %1585 = vmatprep.subr.mxu0 0.0
    %1586 = vmatpush2.msra.mxu0 0.0
    %1587 = vmatprep.subr.mxu0 0.0
    %1588 = vmatpush2.msra.mxu0 0.0
    %1589 = vmatprep.subr.mxu0 0.0
    %1590 = vmatpush2.msra.mxu0 0.0
    %1591 = vmatprep.subr.mxu0 0.0
    %1592 = vmatpush2.msra.mxu0 0.0
    %1593 = vmatprep.subr.mxu0 0.0
    %1594 = vmatpush2.msra.mxu0 0.0
    %1595 = vmatprep.subr.mxu0 0.0
    %1596 = vmatpush2.msra.mxu0 0.0
    %1597 = vmatprep.subr.mxu0 0.0
    %1598 = vmatpush2.msra.mxu0 0.0
    %1599 = vmatprep.subr.mxu0 0.0
    %1600 = vmatpush2.msra.mxu0 0.0
    %1601 = vmatprep.subr.mxu0 0.0
    %1602 = vmatpush2.msra.mxu0 0.0
    %1603 = vmatprep.mubr.f32.mxu0 0.0
    %1604 = vmatmul.mubr.f32.gmra.mxu0 %v1534
    %v1605 = vpop.f32.mrf.mxu0
    %v1606 = vadd.f32 %v1531, %v1605
    %v1607 = vpop.f32.mrf.mxu0
    %1608 = vmatprep.mubr.f32.mxu0 0.0
    %1609 = vmatmul.mubr.f32.gmra.mxu0 %v1537
    %v1610 = vpop.f32.mrf.mxu0
    %v1611 = vadd.f32 %v1531, %v1610
    %v1612 = vpop.f32.mrf.mxu0
    %1613 = vdwg.mxu0
    %1614 = vst.msk [vmem:[#allocation9] sm:$0xff] %vm65, %v1606
    %1615 = vst.msk [vmem:[#allocation9 + $0x8] sm:$0xff] %vm65, %v1611
    // Predicated region
    $region30: #{tpu_custom_call.1} parent=1 // pred_check
      _
    $region31: #{tpu_custom_call.1} parent=1 // pred_check_branch
      %1617 = sbr.rel (0) target = $region33
    $region32: #{tpu_custom_call.1} parent=1 // pred_region
      %s1619 = ssub.s32 256, 256
      %1620 = vsyncadd [#allocation5], %s1619
      %s1621 = sshll.u32 [#allocation9], 4
      %s1622 = int_to_ptr.vmem [resolvable:$true] %s1621
      %1627 = dma.vmem_to_hbm [thread:$0]  %s1622, 256, %s4, [#allocation5], 128, 128, 8
    $region33: #{tpu_custom_call.1} parent=1 // pred_fallthru
      _
    // Predicated region
    $region34: #{tpu_custom_call.1} parent=1 // pred_check
      _
    $region35: #{tpu_custom_call.1} parent=1 // pred_check_branch
      %1629 = sbr.rel (0) target = $region37
    $region36: #{tpu_custom_call.1} parent=1 // pred_region
      %1630 = dma.done [#allocation5], 256
    $region37: #{tpu_custom_call.1} parent=1 // pred_fallthru
      _
    %1631 = vsyncpa [#allocation4], 1
    %1632 = vsyncpa [#allocation7], 1
    %1633 = vsyncpa [#allocation5], 1

</llo_original>
